<compile_context>
chip_gen: v7x
topology: tpu7x:2x2x1
jax: 0.10.0
libtpu: 0.0.40
codegen_flags: <defaults>
</compile_context>

<pallas_src>
import functools

import jax
import jax.numpy as jnp
from jax.experimental import pallas as pl
from jax.experimental.pallas import tpu as pltpu


# ----------------------------- hyper-params ---------------------------------
class HP:
    lstm_hid_size = 32
    n_lstm_layers = 2
    batch_size = 4


INPUT_DIM = 16
OUTPUT_DIM = 8
SEQ_LEN = 8


# ------------------------------ Pallas kernel -------------------------------
def _make_lstm_kernel(n_layers, Bp, T, D, H, O):
    """Builds the kernel body.  Ref order:
       x(T*Bp, D) time-major flattened, [wihT, whhT, bias] * n_layers,
       woutT(H, O), bout(1, O), out(Bp, O),
       scratch: proj_buf(T*Bp, 4H)."""

    def kernel(*refs):
        x_ref = refs[0]                                   # (T*Bp, D)
        layer_refs = []
        idx = 1
        for _ in range(n_layers):
            layer_refs.append((refs[idx], refs[idx + 1], refs[idx + 2]))
            idx += 3
        wout_ref, bout_ref = refs[idx], refs[idx + 1]
        out_ref = refs[idx + 2]
        proj_buf = refs[idx + 3]                          # (T*Bp, 4H) VMEM

        # --- hoisted layer-0 input projection for ALL timesteps -------------
        # One well-shaped GEMM off the serial recurrence, bias folded in.
        wih0T = layer_refs[0][0][...]                     # (D, 4H)
        b0 = layer_refs[0][2][...]                        # (1, 4H)
        proj_buf[...] = (
            jnp.dot(x_ref[...], wih0T, preferred_element_type=jnp.float32)
            + b0)

        # Load remaining weights once (they live in vregs for the whole loop).
        whhT = [layer_refs[l][1][...] for l in range(n_layers)]   # (H, 4H)
        wihT = [None] + [layer_refs[l][0][...] for l in range(1, n_layers)]
        bias = [None] + [layer_refs[l][2][...] for l in range(1, n_layers)]

        # None encodes "state is exactly zero" (t == 0 specialization).
        h = [None] * n_layers
        c = [None] * n_layers

        def cell(gates_lin, c_old):
            # 1 full-width sigmoid over (Bp,4H) + tanh on the g slice.
            sig = jax.nn.sigmoid(gates_lin)
            i_g = sig[:, 0 * H:1 * H]
            f_g = sig[:, 1 * H:2 * H]
            o_g = sig[:, 3 * H:4 * H]
            g_g = jnp.tanh(gates_lin[:, 2 * H:3 * H])
            if c_old is None:                 # t == 0: c_old == 0, skip f*c
                c_new = i_g * g_g
            else:
                c_new = f_g * c_old + i_g * g_g
            h_new = o_g * jnp.tanh(c_new)
            return h_new, c_new

        # --- wavefront over (layer, time) ------------------------------------
        # Step s: layer l handles timestep t = s - l.  Layer l (l>=1) reads
        # h[l-1] committed at step s-1 (== layer l-1's hidden at time t), so
        # all reads happen before any commit in a step.
        n_steps = T + n_layers - 1
        for s in range(n_steps):
            updates = []
            for l in range(n_layers):
                t = s - l
                if t < 0 or t >= T:
                    continue
                if l == 0:
                    # Sublane-aligned static slice of the hoisted projection.
                    lin = proj_buf[t * Bp:(t + 1) * Bp, :]
                else:
                    # Input-side matmul: operand h[l-1] is from the previous
                    # wavefront step, so this push is off layer l's serial
                    # chain and accumulates with the recurrent push below.
                    lin = (jnp.dot(h[l - 1], wihT[l],
                                   preferred_element_type=jnp.float32)
                           + bias[l])
                if h[l] is not None:          # t > 0: recurrent matmul
                    lin = lin + jnp.dot(h[l], whhT[l],
                                        preferred_element_type=jnp.float32)
                h_new, c_new = cell(lin, c[l])
                updates.append((l, h_new, c_new))
            # Commit after all reads so each layer sees the previous step's h.
            for l, h_new, c_new in updates:
                h[l], c[l] = h_new, c_new

        # Final Linear on the last-timestep hidden of the top layer.
        out_ref[...] = (jnp.dot(h[n_layers - 1], wout_ref[...],
                                preferred_element_type=jnp.float32)
                        + bout_ref[...])

    return kernel


@functools.partial(jax.jit, static_argnames=("n_layers", "hidden", "out_dim"))
def lstm_class_forward(x, flat_params, *, n_layers, hidden, out_dim):
    """x: (B, T, D) float32 (batch_first).  flat_params: list (see init)."""
    B, T, D = x.shape
    H, O = hidden, out_dim

    # Pad batch to the f32 sublane tile (8) so every step is a clean tile.
    Bp = max(8, ((B + 7) // 8) * 8)

    x_tm = jnp.transpose(x, (1, 0, 2))                    # (T, B, D) time-major
    if Bp != B:
        x_tm = jnp.pad(x_tm, ((0, 0), (0, Bp - B), (0, 0)))
    x_flat = x_tm.reshape(T * Bp, D)                      # (T*Bp, D)

    kernel = _make_lstm_kernel(n_layers, Bp, T, D, H, O)
    inputs = [x_flat] + list(flat_params)
    vmem_spec = pl.BlockSpec(memory_space=pltpu.MemorySpace.VMEM)

    out_padded = pl.pallas_call(
        kernel,
        out_shape=jax.ShapeDtypeStruct((Bp, O), jnp.float32),
        in_specs=[vmem_spec] * len(inputs),
        out_specs=vmem_spec,
        scratch_shapes=[pltpu.VMEM((T * Bp, 4 * H), jnp.float32)],
    )(*inputs)
    return out_padded[:B]


# --------------------------- parameter construction -------------------------
def init_params(key, n_layers, input_dim, hidden, out_dim):
    """PyTorch-style uniform(-1/sqrt(H), 1/sqrt(H)) init, deterministic.

    Weights are pre-transposed so the kernel does x @ W^T directly.
    b_ih + b_hh are folded into a single bias per layer."""
    H = hidden
    bound = 1.0 / jnp.sqrt(jnp.float32(H))
    flat = []
    for l in range(n_layers):
        in_dim = input_dim if l == 0 else H
        key, k1, k2, k3, k4 = jax.random.split(key, 5)
        w_ih = jax.random.uniform(k1, (4 * H, in_dim), jnp.float32, -bound, bound)
        w_hh = jax.random.uniform(k2, (4 * H, H), jnp.float32, -bound, bound)
        b_ih = jax.random.uniform(k3, (4 * H,), jnp.float32, -bound, bound)
        b_hh = jax.random.uniform(k4, (4 * H,), jnp.float32, -bound, bound)
        flat += [w_ih.T, w_hh.T, (b_ih + b_hh)[None, :]]
    key, k1, k2 = jax.random.split(key, 3)
    w_out = jax.random.uniform(k1, (out_dim, H), jnp.float32, -bound, bound)
    b_out = jax.random.uniform(k2, (out_dim,), jnp.float32, -bound, bound)
    flat += [w_out.T, b_out[None, :]]
    return flat


# ------------------------------ pure-JAX reference --------------------------
def lstm_ref(x, flat_params, n_layers, hidden):
    B, T, D = x.shape
    H = hidden
    seq = x
    idx = 0
    for _ in range(n_layers):
        wihT, whhT, b = flat_params[idx], flat_params[idx + 1], flat_params[idx + 2]
        idx += 3
        h = jnp.zeros((B, H), jnp.float32)
        c = jnp.zeros((B, H), jnp.float32)
        outs = []
        for t in range(T):
            gates = seq[:, t] @ wihT + h @ whhT + b
            i_g = jax.nn.sigmoid(gates[:, 0 * H:1 * H])
            f_g = jax.nn.sigmoid(gates[:, 1 * H:2 * H])
            g_g = jnp.tanh(gates[:, 2 * H:3 * H])
            o_g = jax.nn.sigmoid(gates[:, 3 * H:4 * H])
            c = f_g * c + i_g * g_g
            h = o_g * jnp.tanh(c)
            outs.append(h)
        seq = jnp.stack(outs, axis=1)
    woutT, bout = flat_params[idx], flat_params[idx + 1]
    return seq[:, -1] @ woutT + bout


# ----------------------------------- main ------------------------------------
if __name__ == "__main__":
    hp = HP()
    key = jax.random.PRNGKey(0)
    kx, kp = jax.random.split(key)

    x = jax.random.normal(kx, (hp.batch_size, SEQ_LEN, INPUT_DIM), jnp.float32)
    params = init_params(kp, hp.n_lstm_layers, INPUT_DIM, hp.lstm_hid_size,
                         OUTPUT_DIM)

    out = lstm_class_forward(x, params, n_layers=hp.n_lstm_layers,
                             hidden=hp.lstm_hid_size, out_dim=OUTPUT_DIM)
    out = jax.block_until_ready(out)

    ref = lstm_ref(x, params, hp.n_lstm_layers, hp.lstm_hid_size)
    assert out.shape == (hp.batch_size, OUTPUT_DIM)
    assert jnp.allclose(out, ref, atol=1e-5, rtol=1e-5), "mismatch vs reference"

    print("KERNEL_OK")
</pallas_src>

<mosaic_0001>
module attributes {stable_mosaic.version = 11 : i64} {
  func.func @kernel(%arg0: memref<64x16xf32, #tpu.memory_space<vmem>>, %arg1: memref<16x128xf32, #tpu.memory_space<vmem>>, %arg2: memref<32x128xf32, #tpu.memory_space<vmem>>, %arg3: memref<1x128xf32, #tpu.memory_space<vmem>>, %arg4: memref<32x128xf32, #tpu.memory_space<vmem>>, %arg5: memref<32x128xf32, #tpu.memory_space<vmem>>, %arg6: memref<1x128xf32, #tpu.memory_space<vmem>>, %arg7: memref<32x8xf32, #tpu.memory_space<vmem>>, %arg8: memref<1x8xf32, #tpu.memory_space<vmem>>, %arg9: memref<8x8xf32, #tpu.memory_space<vmem>>, %arg10: memref<64x128xf32, #tpu.memory_space<vmem>>) attributes {dimension_semantics = [], scalar_prefetch = 0 : i64, scratch_operands = 1 : i64, tpu.core_type = #tpu.core_type<tc>} {
    %c0 = arith.constant 0 : index
    %c0_0 = arith.constant 0 : index
    %0 = vector.load %arg1[%c0, %c0_0] : memref<16x128xf32, #tpu.memory_space<vmem>>, vector<16x128xf32>
    %c0_1 = arith.constant 0 : index
    %c0_2 = arith.constant 0 : index
    %1 = vector.load %arg3[%c0_1, %c0_2] : memref<1x128xf32, #tpu.memory_space<vmem>>, vector<1x128xf32>
    %c0_3 = arith.constant 0 : index
    %c0_4 = arith.constant 0 : index
    %2 = vector.load %arg0[%c0_3, %c0_4] : memref<64x16xf32, #tpu.memory_space<vmem>>, vector<64x16xf32>
    %cst = arith.constant dense<0.000000e+00> : vector<64x128xf32>
    %3 = tpu.matmul %2, %0, %cst {dimension_numbers = #tpu.dot_dimension_numbers<[1], [0], [0], [1], [0, 0, 1, 1], [], []>} : vector<64x16xf32>, vector<16x128xf32>, vector<64x128xf32> -> vector<64x128xf32>
    %4 = vector.broadcast %1 : vector<1x128xf32> to vector<64x128xf32>
    %5 = arith.addf %3, %4 : vector<64x128xf32>
    %c0_5 = arith.constant 0 : index
    %c0_6 = arith.constant 0 : index
    %6 = vector.load %arg10[%c0_5, %c0_6] : memref<64x128xf32, #tpu.memory_space<vmem>>, vector<64x128xf32>
    tpu.vector_store %arg10[%c0_5, %c0_6], %5 {strides = array<i32>} : memref<64x128xf32, #tpu.memory_space<vmem>>, vector<64x128xf32>,
    %c0_7 = arith.constant 0 : index
    %c0_8 = arith.constant 0 : index
    %7 = vector.load %arg2[%c0_7, %c0_8] : memref<32x128xf32, #tpu.memory_space<vmem>>, vector<32x128xf32>
    %c0_9 = arith.constant 0 : index
    %c0_10 = arith.constant 0 : index
    %8 = vector.load %arg5[%c0_9, %c0_10] : memref<32x128xf32, #tpu.memory_space<vmem>>, vector<32x128xf32>
    %c0_11 = arith.constant 0 : index
    %c0_12 = arith.constant 0 : index
    %9 = vector.load %arg4[%c0_11, %c0_12] : memref<32x128xf32, #tpu.memory_space<vmem>>, vector<32x128xf32>
    %c0_13 = arith.constant 0 : index
    %c0_14 = arith.constant 0 : index
    %10 = vector.load %arg6[%c0_13, %c0_14] : memref<1x128xf32, #tpu.memory_space<vmem>>, vector<1x128xf32>
    %c0_15 = arith.constant 0 : index
    %c0_16 = arith.constant 0 : index
    %11 = vector.load %arg10[%c0_15, %c0_16] : memref<64x128xf32, #tpu.memory_space<vmem>>, vector<8x128xf32>
    %12 = arith.negf %11 : vector<8x128xf32>
    %13 = math.exp %12 : vector<8x128xf32>
    %cst_17 = arith.constant 1.000000e+00 : f32
    %14 = vector.broadcast %cst_17 : f32 to vector<8x128xf32>
    %15 = arith.addf %14, %13 : vector<8x128xf32>
    %16 = arith.divf %14, %15 : vector<8x128xf32>
    %17 = vector.extract_strided_slice %16 {offsets = [0, 0], sizes = [8, 32], strides = [1, 1]} : vector<8x128xf32> to vector<8x32xf32>
    %18 = vector.extract_strided_slice %16 {offsets = [0, 96], sizes = [8, 32], strides = [1, 1]} : vector<8x128xf32> to vector<8x32xf32>
    %19 = vector.extract_strided_slice %11 {offsets = [0, 64], sizes = [8, 32], strides = [1, 1]} : vector<8x128xf32> to vector<8x32xf32>
    %20 = math.tanh %19 : vector<8x32xf32>
    %21 = arith.mulf %17, %20 : vector<8x32xf32>
    %22 = math.tanh %21 : vector<8x32xf32>
    %23 = arith.mulf %18, %22 : vector<8x32xf32>
    %c8 = arith.constant 8 : index
    %c0_18 = arith.constant 0 : index
    %24 = vector.load %arg10[%c8, %c0_18] : memref<64x128xf32, #tpu.memory_space<vmem>>, vector<8x128xf32>
    %cst_19 = arith.constant dense<0.000000e+00> : vector<8x128xf32>
    %25 = tpu.matmul %23, %7, %cst_19 {dimension_numbers = #tpu.dot_dimension_numbers<[1], [0], [0], [1], [0, 0, 1, 1], [], []>} : vector<8x32xf32>, vector<32x128xf32>, vector<8x128xf32> -> vector<8x128xf32>
    %26 = arith.addf %24, %25 : vector<8x128xf32>
    %27 = arith.negf %26 : vector<8x128xf32>
    %28 = math.exp %27 : vector<8x128xf32>
    %cst_20 = arith.constant 1.000000e+00 : f32
    %29 = vector.broadcast %cst_20 : f32 to vector<8x128xf32>
    %30 = arith.addf %29, %28 : vector<8x128xf32>
    %31 = arith.divf %29, %30 : vector<8x128xf32>
    %32 = vector.extract_strided_slice %31 {offsets = [0, 0], sizes = [8, 32], strides = [1, 1]} : vector<8x128xf32> to vector<8x32xf32>
    %33 = vector.extract_strided_slice %31 {offsets = [0, 32], sizes = [8, 32], strides = [1, 1]} : vector<8x128xf32> to vector<8x32xf32>
    %34 = vector.extract_strided_slice %31 {offsets = [0, 96], sizes = [8, 32], strides = [1, 1]} : vector<8x128xf32> to vector<8x32xf32>
    %35 = vector.extract_strided_slice %26 {offsets = [0, 64], sizes = [8, 32], strides = [1, 1]} : vector<8x128xf32> to vector<8x32xf32>
    %36 = math.tanh %35 : vector<8x32xf32>
    %37 = arith.mulf %33, %21 : vector<8x32xf32>
    %38 = arith.mulf %32, %36 : vector<8x32xf32>
    %39 = arith.addf %37, %38 : vector<8x32xf32>
    %40 = math.tanh %39 : vector<8x32xf32>
    %41 = arith.mulf %34, %40 : vector<8x32xf32>
    %cst_21 = arith.constant dense<0.000000e+00> : vector<8x128xf32>
    %42 = tpu.matmul %23, %9, %cst_21 {dimension_numbers = #tpu.dot_dimension_numbers<[1], [0], [0], [1], [0, 0, 1, 1], [], []>} : vector<8x32xf32>, vector<32x128xf32>, vector<8x128xf32> -> vector<8x128xf32>
    %43 = vector.broadcast %10 : vector<1x128xf32> to vector<8x128xf32>
    %44 = arith.addf %42, %43 : vector<8x128xf32>
    %45 = arith.negf %44 : vector<8x128xf32>
    %46 = math.exp %45 : vector<8x128xf32>
    %cst_22 = arith.constant 1.000000e+00 : f32
    %47 = vector.broadcast %cst_22 : f32 to vector<8x128xf32>
    %48 = arith.addf %47, %46 : vector<8x128xf32>
    %49 = arith.divf %47, %48 : vector<8x128xf32>
    %50 = vector.extract_strided_slice %49 {offsets = [0, 0], sizes = [8, 32], strides = [1, 1]} : vector<8x128xf32> to vector<8x32xf32>
    %51 = vector.extract_strided_slice %49 {offsets = [0, 96], sizes = [8, 32], strides = [1, 1]} : vector<8x128xf32> to vector<8x32xf32>
    %52 = vector.extract_strided_slice %44 {offsets = [0, 64], sizes = [8, 32], strides = [1, 1]} : vector<8x128xf32> to vector<8x32xf32>
    %53 = math.tanh %52 : vector<8x32xf32>
    %54 = arith.mulf %50, %53 : vector<8x32xf32>
    %55 = math.tanh %54 : vector<8x32xf32>
    %56 = arith.mulf %51, %55 : vector<8x32xf32>
    %c16 = arith.constant 16 : index
    %c0_23 = arith.constant 0 : index
    %57 = vector.load %arg10[%c16, %c0_23] : memref<64x128xf32, #tpu.memory_space<vmem>>, vector<8x128xf32>
    %cst_24 = arith.constant dense<0.000000e+00> : vector<8x128xf32>
    %58 = tpu.matmul %41, %7, %cst_24 {dimension_numbers = #tpu.dot_dimension_numbers<[1], [0], [0], [1], [0, 0, 1, 1], [], []>} : vector<8x32xf32>, vector<32x128xf32>, vector<8x128xf32> -> vector<8x128xf32>
    %59 = arith.addf %57, %58 : vector<8x128xf32>
    %60 = arith.negf %59 : vector<8x128xf32>
    %61 = math.exp %60 : vector<8x128xf32>
    %cst_25 = arith.constant 1.000000e+00 : f32
    %62 = vector.broadcast %cst_25 : f32 to vector<8x128xf32>
    %63 = arith.addf %62, %61 : vector<8x128xf32>
    %64 = arith.divf %62, %63 : vector<8x128xf32>
    %65 = vector.extract_strided_slice %64 {offsets = [0, 0], sizes = [8, 32], strides = [1, 1]} : vector<8x128xf32> to vector<8x32xf32>
    %66 = vector.extract_strided_slice %64 {offsets = [0, 32], sizes = [8, 32], strides = [1, 1]} : vector<8x128xf32> to vector<8x32xf32>
    %67 = vector.extract_strided_slice %64 {offsets = [0, 96], sizes = [8, 32], strides = [1, 1]} : vector<8x128xf32> to vector<8x32xf32>
    %68 = vector.extract_strided_slice %59 {offsets = [0, 64], sizes = [8, 32], strides = [1, 1]} : vector<8x128xf32> to vector<8x32xf32>
    %69 = math.tanh %68 : vector<8x32xf32>
    %70 = arith.mulf %66, %39 : vector<8x32xf32>
    %71 = arith.mulf %65, %69 : vector<8x32xf32>
    %72 = arith.addf %70, %71 : vector<8x32xf32>
    %73 = math.tanh %72 : vector<8x32xf32>
    %74 = arith.mulf %67, %73 : vector<8x32xf32>
    %cst_26 = arith.constant dense<0.000000e+00> : vector<8x128xf32>
    %75 = tpu.matmul %41, %9, %cst_26 {dimension_numbers = #tpu.dot_dimension_numbers<[1], [0], [0], [1], [0, 0, 1, 1], [], []>} : vector<8x32xf32>, vector<32x128xf32>, vector<8x128xf32> -> vector<8x128xf32>
    %76 = vector.broadcast %10 : vector<1x128xf32> to vector<8x128xf32>
    %77 = arith.addf %75, %76 : vector<8x128xf32>
    %cst_27 = arith.constant dense<0.000000e+00> : vector<8x128xf32>
    %78 = tpu.matmul %56, %8, %cst_27 {dimension_numbers = #tpu.dot_dimension_numbers<[1], [0], [0], [1], [0, 0, 1, 1], [], []>} : vector<8x32xf32>, vector<32x128xf32>, vector<8x128xf32> -> vector<8x128xf32>
    %79 = arith.addf %77, %78 : vector<8x128xf32>
    %80 = arith.negf %79 : vector<8x128xf32>
    %81 = math.exp %80 : vector<8x128xf32>
    %cst_28 = arith.constant 1.000000e+00 : f32
    %82 = vector.broadcast %cst_28 : f32 to vector<8x128xf32>
    %83 = arith.addf %82, %81 : vector<8x128xf32>
    %84 = arith.divf %82, %83 : vector<8x128xf32>
    %85 = vector.extract_strided_slice %84 {offsets = [0, 0], sizes = [8, 32], strides = [1, 1]} : vector<8x128xf32> to vector<8x32xf32>
    %86 = vector.extract_strided_slice %84 {offsets = [0, 32], sizes = [8, 32], strides = [1, 1]} : vector<8x128xf32> to vector<8x32xf32>
    %87 = vector.extract_strided_slice %84 {offsets = [0, 96], sizes = [8, 32], strides = [1, 1]} : vector<8x128xf32> to vector<8x32xf32>
    %88 = vector.extract_strided_slice %79 {offsets = [0, 64], sizes = [8, 32], strides = [1, 1]} : vector<8x128xf32> to vector<8x32xf32>
    %89 = math.tanh %88 : vector<8x32xf32>
    %90 = arith.mulf %86, %54 : vector<8x32xf32>
    %91 = arith.mulf %85, %89 : vector<8x32xf32>
    %92 = arith.addf %90, %91 : vector<8x32xf32>
    %93 = math.tanh %92 : vector<8x32xf32>
    %94 = arith.mulf %87, %93 : vector<8x32xf32>
    %c24 = arith.constant 24 : index
    %c0_29 = arith.constant 0 : index
    %95 = vector.load %arg10[%c24, %c0_29] : memref<64x128xf32, #tpu.memory_space<vmem>>, vector<8x128xf32>
    %cst_30 = arith.constant dense<0.000000e+00> : vector<8x128xf32>
    %96 = tpu.matmul %74, %7, %cst_30 {dimension_numbers = #tpu.dot_dimension_numbers<[1], [0], [0], [1], [0, 0, 1, 1], [], []>} : vector<8x32xf32>, vector<32x128xf32>, vector<8x128xf32> -> vector<8x128xf32>
    %97 = arith.addf %95, %96 : vector<8x128xf32>
    %98 = arith.negf %97 : vector<8x128xf32>
    %99 = math.exp %98 : vector<8x128xf32>
    %cst_31 = arith.constant 1.000000e+00 : f32
    %100 = vector.broadcast %cst_31 : f32 to vector<8x128xf32>
    %101 = arith.addf %100, %99 : vector<8x128xf32>
    %102 = arith.divf %100, %101 : vector<8x128xf32>
    %103 = vector.extract_strided_slice %102 {offsets = [0, 0], sizes = [8, 32], strides = [1, 1]} : vector<8x128xf32> to vector<8x32xf32>
    %104 = vector.extract_strided_slice %102 {offsets = [0, 32], sizes = [8, 32], strides = [1, 1]} : vector<8x128xf32> to vector<8x32xf32>
    %105 = vector.extract_strided_slice %102 {offsets = [0, 96], sizes = [8, 32], strides = [1, 1]} : vector<8x128xf32> to vector<8x32xf32>
    %106 = vector.extract_strided_slice %97 {offsets = [0, 64], sizes = [8, 32], strides = [1, 1]} : vector<8x128xf32> to vector<8x32xf32>
    %107 = math.tanh %106 : vector<8x32xf32>
    %108 = arith.mulf %104, %72 : vector<8x32xf32>
    %109 = arith.mulf %103, %107 : vector<8x32xf32>
    %110 = arith.addf %108, %109 : vector<8x32xf32>
    %111 = math.tanh %110 : vector<8x32xf32>
    %112 = arith.mulf %105, %111 : vector<8x32xf32>
    %cst_32 = arith.constant dense<0.000000e+00> : vector<8x128xf32>
    %113 = tpu.matmul %74, %9, %cst_32 {dimension_numbers = #tpu.dot_dimension_numbers<[1], [0], [0], [1], [0, 0, 1, 1], [], []>} : vector<8x32xf32>, vector<32x128xf32>, vector<8x128xf32> -> vector<8x128xf32>
    %114 = vector.broadcast %10 : vector<1x128xf32> to vector<8x128xf32>
    %115 = arith.addf %113, %114 : vector<8x128xf32>
    %cst_33 = arith.constant dense<0.000000e+00> : vector<8x128xf32>
    %116 = tpu.matmul %94, %8, %cst_33 {dimension_numbers = #tpu.dot_dimension_numbers<[1], [0], [0], [1], [0, 0, 1, 1], [], []>} : vector<8x32xf32>, vector<32x128xf32>, vector<8x128xf32> -> vector<8x128xf32>
    %117 = arith.addf %115, %116 : vector<8x128xf32>
    %118 = arith.negf %117 : vector<8x128xf32>
    %119 = math.exp %118 : vector<8x128xf32>
    %cst_34 = arith.constant 1.000000e+00 : f32
    %120 = vector.broadcast %cst_34 : f32 to vector<8x128xf32>
    %121 = arith.addf %120, %119 : vector<8x128xf32>
    %122 = arith.divf %120, %121 : vector<8x128xf32>
    %123 = vector.extract_strided_slice %122 {offsets = [0, 0], sizes = [8, 32], strides = [1, 1]} : vector<8x128xf32> to vector<8x32xf32>
    %124 = vector.extract_strided_slice %122 {offsets = [0, 32], sizes = [8, 32], strides = [1, 1]} : vector<8x128xf32> to vector<8x32xf32>
    %125 = vector.extract_strided_slice %122 {offsets = [0, 96], sizes = [8, 32], strides = [1, 1]} : vector<8x128xf32> to vector<8x32xf32>
    %126 = vector.extract_strided_slice %117 {offsets = [0, 64], sizes = [8, 32], strides = [1, 1]} : vector<8x128xf32> to vector<8x32xf32>
    %127 = math.tanh %126 : vector<8x32xf32>
    %128 = arith.mulf %124, %92 : vector<8x32xf32>
    %129 = arith.mulf %123, %127 : vector<8x32xf32>
    %130 = arith.addf %128, %129 : vector<8x32xf32>
    %131 = math.tanh %130 : vector<8x32xf32>
    %132 = arith.mulf %125, %131 : vector<8x32xf32>
    %c32 = arith.constant 32 : index
    %c0_35 = arith.constant 0 : index
    %133 = vector.load %arg10[%c32, %c0_35] : memref<64x128xf32, #tpu.memory_space<vmem>>, vector<8x128xf32>
    %cst_36 = arith.constant dense<0.000000e+00> : vector<8x128xf32>
    %134 = tpu.matmul %112, %7, %cst_36 {dimension_numbers = #tpu.dot_dimension_numbers<[1], [0], [0], [1], [0, 0, 1, 1], [], []>} : vector<8x32xf32>, vector<32x128xf32>, vector<8x128xf32> -> vector<8x128xf32>
    %135 = arith.addf %133, %134 : vector<8x128xf32>
    %136 = arith.negf %135 : vector<8x128xf32>
    %137 = math.exp %136 : vector<8x128xf32>
    %cst_37 = arith.constant 1.000000e+00 : f32
    %138 = vector.broadcast %cst_37 : f32 to vector<8x128xf32>
    %139 = arith.addf %138, %137 : vector<8x128xf32>
    %140 = arith.divf %138, %139 : vector<8x128xf32>
    %141 = vector.extract_strided_slice %140 {offsets = [0, 0], sizes = [8, 32], strides = [1, 1]} : vector<8x128xf32> to vector<8x32xf32>
    %142 = vector.extract_strided_slice %140 {offsets = [0, 32], sizes = [8, 32], strides = [1, 1]} : vector<8x128xf32> to vector<8x32xf32>
    %143 = vector.extract_strided_slice %140 {offsets = [0, 96], sizes = [8, 32], strides = [1, 1]} : vector<8x128xf32> to vector<8x32xf32>
    %144 = vector.extract_strided_slice %135 {offsets = [0, 64], sizes = [8, 32], strides = [1, 1]} : vector<8x128xf32> to vector<8x32xf32>
    %145 = math.tanh %144 : vector<8x32xf32>
    %146 = arith.mulf %142, %110 : vector<8x32xf32>
    %147 = arith.mulf %141, %145 : vector<8x32xf32>
    %148 = arith.addf %146, %147 : vector<8x32xf32>
    %149 = math.tanh %148 : vector<8x32xf32>
    %150 = arith.mulf %143, %149 : vector<8x32xf32>
    %cst_38 = arith.constant dense<0.000000e+00> : vector<8x128xf32>
    %151 = tpu.matmul %112, %9, %cst_38 {dimension_numbers = #tpu.dot_dimension_numbers<[1], [0], [0], [1], [0, 0, 1, 1], [], []>} : vector<8x32xf32>, vector<32x128xf32>, vector<8x128xf32> -> vector<8x128xf32>
    %152 = vector.broadcast %10 : vector<1x128xf32> to vector<8x128xf32>
    %153 = arith.addf %151, %152 : vector<8x128xf32>
    %cst_39 = arith.constant dense<0.000000e+00> : vector<8x128xf32>
    %154 = tpu.matmul %132, %8, %cst_39 {dimension_numbers = #tpu.dot_dimension_numbers<[1], [0], [0], [1], [0, 0, 1, 1], [], []>} : vector<8x32xf32>, vector<32x128xf32>, vector<8x128xf32> -> vector<8x128xf32>
    %155 = arith.addf %153, %154 : vector<8x128xf32>
    %156 = arith.negf %155 : vector<8x128xf32>
    %157 = math.exp %156 : vector<8x128xf32>
    %cst_40 = arith.constant 1.000000e+00 : f32
    %158 = vector.broadcast %cst_40 : f32 to vector<8x128xf32>
    %159 = arith.addf %158, %157 : vector<8x128xf32>
    %160 = arith.divf %158, %159 : vector<8x128xf32>
    %161 = vector.extract_strided_slice %160 {offsets = [0, 0], sizes = [8, 32], strides = [1, 1]} : vector<8x128xf32> to vector<8x32xf32>
    %162 = vector.extract_strided_slice %160 {offsets = [0, 32], sizes = [8, 32], strides = [1, 1]} : vector<8x128xf32> to vector<8x32xf32>
    %163 = vector.extract_strided_slice %160 {offsets = [0, 96], sizes = [8, 32], strides = [1, 1]} : vector<8x128xf32> to vector<8x32xf32>
    %164 = vector.extract_strided_slice %155 {offsets = [0, 64], sizes = [8, 32], strides = [1, 1]} : vector<8x128xf32> to vector<8x32xf32>
    %165 = math.tanh %164 : vector<8x32xf32>
    %166 = arith.mulf %162, %130 : vector<8x32xf32>
    %167 = arith.mulf %161, %165 : vector<8x32xf32>
    %168 = arith.addf %166, %167 : vector<8x32xf32>
    %169 = math.tanh %168 : vector<8x32xf32>
    %170 = arith.mulf %163, %169 : vector<8x32xf32>
    %c40 = arith.constant 40 : index
    %c0_41 = arith.constant 0 : index
    %171 = vector.load %arg10[%c40, %c0_41] : memref<64x128xf32, #tpu.memory_space<vmem>>, vector<8x128xf32>
    %cst_42 = arith.constant dense<0.000000e+00> : vector<8x128xf32>
    %172 = tpu.matmul %150, %7, %cst_42 {dimension_numbers = #tpu.dot_dimension_numbers<[1], [0], [0], [1], [0, 0, 1, 1], [], []>} : vector<8x32xf32>, vector<32x128xf32>, vector<8x128xf32> -> vector<8x128xf32>
    %173 = arith.addf %171, %172 : vector<8x128xf32>
    %174 = arith.negf %173 : vector<8x128xf32>
    %175 = math.exp %174 : vector<8x128xf32>
    %cst_43 = arith.constant 1.000000e+00 : f32
    %176 = vector.broadcast %cst_43 : f32 to vector<8x128xf32>
    %177 = arith.addf %176, %175 : vector<8x128xf32>
    %178 = arith.divf %176, %177 : vector<8x128xf32>
    %179 = vector.extract_strided_slice %178 {offsets = [0, 0], sizes = [8, 32], strides = [1, 1]} : vector<8x128xf32> to vector<8x32xf32>
    %180 = vector.extract_strided_slice %178 {offsets = [0, 32], sizes = [8, 32], strides = [1, 1]} : vector<8x128xf32> to vector<8x32xf32>
    %181 = vector.extract_strided_slice %178 {offsets = [0, 96], sizes = [8, 32], strides = [1, 1]} : vector<8x128xf32> to vector<8x32xf32>
    %182 = vector.extract_strided_slice %173 {offsets = [0, 64], sizes = [8, 32], strides = [1, 1]} : vector<8x128xf32> to vector<8x32xf32>
    %183 = math.tanh %182 : vector<8x32xf32>
    %184 = arith.mulf %180, %148 : vector<8x32xf32>
    %185 = arith.mulf %179, %183 : vector<8x32xf32>
    %186 = arith.addf %184, %185 : vector<8x32xf32>
    %187 = math.tanh %186 : vector<8x32xf32>
    %188 = arith.mulf %181, %187 : vector<8x32xf32>
    %cst_44 = arith.constant dense<0.000000e+00> : vector<8x128xf32>
    %189 = tpu.matmul %150, %9, %cst_44 {dimension_numbers = #tpu.dot_dimension_numbers<[1], [0], [0], [1], [0, 0, 1, 1], [], []>} : vector<8x32xf32>, vector<32x128xf32>, vector<8x128xf32> -> vector<8x128xf32>
    %190 = vector.broadcast %10 : vector<1x128xf32> to vector<8x128xf32>
    %191 = arith.addf %189, %190 : vector<8x128xf32>
    %cst_45 = arith.constant dense<0.000000e+00> : vector<8x128xf32>
    %192 = tpu.matmul %170, %8, %cst_45 {dimension_numbers = #tpu.dot_dimension_numbers<[1], [0], [0], [1], [0, 0, 1, 1], [], []>} : vector<8x32xf32>, vector<32x128xf32>, vector<8x128xf32> -> vector<8x128xf32>
    %193 = arith.addf %191, %192 : vector<8x128xf32>
    %194 = arith.negf %193 : vector<8x128xf32>
    %195 = math.exp %194 : vector<8x128xf32>
    %cst_46 = arith.constant 1.000000e+00 : f32
    %196 = vector.broadcast %cst_46 : f32 to vector<8x128xf32>
    %197 = arith.addf %196, %195 : vector<8x128xf32>
    %198 = arith.divf %196, %197 : vector<8x128xf32>
    %199 = vector.extract_strided_slice %198 {offsets = [0, 0], sizes = [8, 32], strides = [1, 1]} : vector<8x128xf32> to vector<8x32xf32>
    %200 = vector.extract_strided_slice %198 {offsets = [0, 32], sizes = [8, 32], strides = [1, 1]} : vector<8x128xf32> to vector<8x32xf32>
    %201 = vector.extract_strided_slice %198 {offsets = [0, 96], sizes = [8, 32], strides = [1, 1]} : vector<8x128xf32> to vector<8x32xf32>
    %202 = vector.extract_strided_slice %193 {offsets = [0, 64], sizes = [8, 32], strides = [1, 1]} : vector<8x128xf32> to vector<8x32xf32>
    %203 = math.tanh %202 : vector<8x32xf32>
    %204 = arith.mulf %200, %168 : vector<8x32xf32>
    %205 = arith.mulf %199, %203 : vector<8x32xf32>
    %206 = arith.addf %204, %205 : vector<8x32xf32>
    %207 = math.tanh %206 : vector<8x32xf32>
    %208 = arith.mulf %201, %207 : vector<8x32xf32>
    %c48 = arith.constant 48 : index
    %c0_47 = arith.constant 0 : index
    %209 = vector.load %arg10[%c48, %c0_47] : memref<64x128xf32, #tpu.memory_space<vmem>>, vector<8x128xf32>
    %cst_48 = arith.constant dense<0.000000e+00> : vector<8x128xf32>
    %210 = tpu.matmul %188, %7, %cst_48 {dimension_numbers = #tpu.dot_dimension_numbers<[1], [0], [0], [1], [0, 0, 1, 1], [], []>} : vector<8x32xf32>, vector<32x128xf32>, vector<8x128xf32> -> vector<8x128xf32>
    %211 = arith.addf %209, %210 : vector<8x128xf32>
    %212 = arith.negf %211 : vector<8x128xf32>
    %213 = math.exp %212 : vector<8x128xf32>
    %cst_49 = arith.constant 1.000000e+00 : f32
    %214 = vector.broadcast %cst_49 : f32 to vector<8x128xf32>
    %215 = arith.addf %214, %213 : vector<8x128xf32>
    %216 = arith.divf %214, %215 : vector<8x128xf32>
    %217 = vector.extract_strided_slice %216 {offsets = [0, 0], sizes = [8, 32], strides = [1, 1]} : vector<8x128xf32> to vector<8x32xf32>
    %218 = vector.extract_strided_slice %216 {offsets = [0, 32], sizes = [8, 32], strides = [1, 1]} : vector<8x128xf32> to vector<8x32xf32>
    %219 = vector.extract_strided_slice %216 {offsets = [0, 96], sizes = [8, 32], strides = [1, 1]} : vector<8x128xf32> to vector<8x32xf32>
    %220 = vector.extract_strided_slice %211 {offsets = [0, 64], sizes = [8, 32], strides = [1, 1]} : vector<8x128xf32> to vector<8x32xf32>
    %221 = math.tanh %220 : vector<8x32xf32>
    %222 = arith.mulf %218, %186 : vector<8x32xf32>
    %223 = arith.mulf %217, %221 : vector<8x32xf32>
    %224 = arith.addf %222, %223 : vector<8x32xf32>
    %225 = math.tanh %224 : vector<8x32xf32>
    %226 = arith.mulf %219, %225 : vector<8x32xf32>
    %cst_50 = arith.constant dense<0.000000e+00> : vector<8x128xf32>
    %227 = tpu.matmul %188, %9, %cst_50 {dimension_numbers = #tpu.dot_dimension_numbers<[1], [0], [0], [1], [0, 0, 1, 1], [], []>} : vector<8x32xf32>, vector<32x128xf32>, vector<8x128xf32> -> vector<8x128xf32>
    %228 = vector.broadcast %10 : vector<1x128xf32> to vector<8x128xf32>
    %229 = arith.addf %227, %228 : vector<8x128xf32>
    %cst_51 = arith.constant dense<0.000000e+00> : vector<8x128xf32>
    %230 = tpu.matmul %208, %8, %cst_51 {dimension_numbers = #tpu.dot_dimension_numbers<[1], [0], [0], [1], [0, 0, 1, 1], [], []>} : vector<8x32xf32>, vector<32x128xf32>, vector<8x128xf32> -> vector<8x128xf32>
    %231 = arith.addf %229, %230 : vector<8x128xf32>
    %232 = arith.negf %231 : vector<8x128xf32>
    %233 = math.exp %232 : vector<8x128xf32>
    %cst_52 = arith.constant 1.000000e+00 : f32
    %234 = vector.broadcast %cst_52 : f32 to vector<8x128xf32>
    %235 = arith.addf %234, %233 : vector<8x128xf32>
    %236 = arith.divf %234, %235 : vector<8x128xf32>
    %237 = vector.extract_strided_slice %236 {offsets = [0, 0], sizes = [8, 32], strides = [1, 1]} : vector<8x128xf32> to vector<8x32xf32>
    %238 = vector.extract_strided_slice %236 {offsets = [0, 32], sizes = [8, 32], strides = [1, 1]} : vector<8x128xf32> to vector<8x32xf32>
    %239 = vector.extract_strided_slice %236 {offsets = [0, 96], sizes = [8, 32], strides = [1, 1]} : vector<8x128xf32> to vector<8x32xf32>
    %240 = vector.extract_strided_slice %231 {offsets = [0, 64], sizes = [8, 32], strides = [1, 1]} : vector<8x128xf32> to vector<8x32xf32>
    %241 = math.tanh %240 : vector<8x32xf32>
    %242 = arith.mulf %238, %206 : vector<8x32xf32>
    %243 = arith.mulf %237, %241 : vector<8x32xf32>
    %244 = arith.addf %242, %243 : vector<8x32xf32>
    %245 = math.tanh %244 : vector<8x32xf32>
    %246 = arith.mulf %239, %245 : vector<8x32xf32>
    %c56 = arith.constant 56 : index
    %c0_53 = arith.constant 0 : index
    %247 = vector.load %arg10[%c56, %c0_53] : memref<64x128xf32, #tpu.memory_space<vmem>>, vector<8x128xf32>
    %cst_54 = arith.constant dense<0.000000e+00> : vector<8x128xf32>
    %248 = tpu.matmul %226, %7, %cst_54 {dimension_numbers = #tpu.dot_dimension_numbers<[1], [0], [0], [1], [0, 0, 1, 1], [], []>} : vector<8x32xf32>, vector<32x128xf32>, vector<8x128xf32> -> vector<8x128xf32>
    %249 = arith.addf %247, %248 : vector<8x128xf32>
    %250 = arith.negf %249 : vector<8x128xf32>
    %251 = math.exp %250 : vector<8x128xf32>
    %cst_55 = arith.constant 1.000000e+00 : f32
    %252 = vector.broadcast %cst_55 : f32 to vector<8x128xf32>
    %253 = arith.addf %252, %251 : vector<8x128xf32>
    %254 = arith.divf %252, %253 : vector<8x128xf32>
    %255 = vector.extract_strided_slice %254 {offsets = [0, 0], sizes = [8, 32], strides = [1, 1]} : vector<8x128xf32> to vector<8x32xf32>
    %256 = vector.extract_strided_slice %254 {offsets = [0, 32], sizes = [8, 32], strides = [1, 1]} : vector<8x128xf32> to vector<8x32xf32>
    %257 = vector.extract_strided_slice %254 {offsets = [0, 96], sizes = [8, 32], strides = [1, 1]} : vector<8x128xf32> to vector<8x32xf32>
    %258 = vector.extract_strided_slice %249 {offsets = [0, 64], sizes = [8, 32], strides = [1, 1]} : vector<8x128xf32> to vector<8x32xf32>
    %259 = math.tanh %258 : vector<8x32xf32>
    %260 = arith.mulf %256, %224 : vector<8x32xf32>
    %261 = arith.mulf %255, %259 : vector<8x32xf32>
    %262 = arith.addf %260, %261 : vector<8x32xf32>
    %263 = math.tanh %262 : vector<8x32xf32>
    %264 = arith.mulf %257, %263 : vector<8x32xf32>
    %cst_56 = arith.constant dense<0.000000e+00> : vector<8x128xf32>
    %265 = tpu.matmul %226, %9, %cst_56 {dimension_numbers = #tpu.dot_dimension_numbers<[1], [0], [0], [1], [0, 0, 1, 1], [], []>} : vector<8x32xf32>, vector<32x128xf32>, vector<8x128xf32> -> vector<8x128xf32>
    %266 = vector.broadcast %10 : vector<1x128xf32> to vector<8x128xf32>
    %267 = arith.addf %265, %266 : vector<8x128xf32>
    %cst_57 = arith.constant dense<0.000000e+00> : vector<8x128xf32>
    %268 = tpu.matmul %246, %8, %cst_57 {dimension_numbers = #tpu.dot_dimension_numbers<[1], [0], [0], [1], [0, 0, 1, 1], [], []>} : vector<8x32xf32>, vector<32x128xf32>, vector<8x128xf32> -> vector<8x128xf32>
    %269 = arith.addf %267, %268 : vector<8x128xf32>
    %270 = arith.negf %269 : vector<8x128xf32>
    %271 = math.exp %270 : vector<8x128xf32>
    %cst_58 = arith.constant 1.000000e+00 : f32
    %272 = vector.broadcast %cst_58 : f32 to vector<8x128xf32>
    %273 = arith.addf %272, %271 : vector<8x128xf32>
    %274 = arith.divf %272, %273 : vector<8x128xf32>
    %275 = vector.extract_strided_slice %274 {offsets = [0, 0], sizes = [8, 32], strides = [1, 1]} : vector<8x128xf32> to vector<8x32xf32>
    %276 = vector.extract_strided_slice %274 {offsets = [0, 32], sizes = [8, 32], strides = [1, 1]} : vector<8x128xf32> to vector<8x32xf32>
    %277 = vector.extract_strided_slice %274 {offsets = [0, 96], sizes = [8, 32], strides = [1, 1]} : vector<8x128xf32> to vector<8x32xf32>
    %278 = vector.extract_strided_slice %269 {offsets = [0, 64], sizes = [8, 32], strides = [1, 1]} : vector<8x128xf32> to vector<8x32xf32>
    %279 = math.tanh %278 : vector<8x32xf32>
    %280 = arith.mulf %276, %244 : vector<8x32xf32>
    %281 = arith.mulf %275, %279 : vector<8x32xf32>
    %282 = arith.addf %280, %281 : vector<8x32xf32>
    %283 = math.tanh %282 : vector<8x32xf32>
    %284 = arith.mulf %277, %283 : vector<8x32xf32>
    %cst_59 = arith.constant dense<0.000000e+00> : vector<8x128xf32>
    %285 = tpu.matmul %264, %9, %cst_59 {dimension_numbers = #tpu.dot_dimension_numbers<[1], [0], [0], [1], [0, 0, 1, 1], [], []>} : vector<8x32xf32>, vector<32x128xf32>, vector<8x128xf32> -> vector<8x128xf32>
    %286 = vector.broadcast %10 : vector<1x128xf32> to vector<8x128xf32>
    %287 = arith.addf %285, %286 : vector<8x128xf32>
    %cst_60 = arith.constant dense<0.000000e+00> : vector<8x128xf32>
    %288 = tpu.matmul %284, %8, %cst_60 {dimension_numbers = #tpu.dot_dimension_numbers<[1], [0], [0], [1], [0, 0, 1, 1], [], []>} : vector<8x32xf32>, vector<32x128xf32>, vector<8x128xf32> -> vector<8x128xf32>
    %289 = arith.addf %287, %288 : vector<8x128xf32>
    %290 = arith.negf %289 : vector<8x128xf32>
    %291 = math.exp %290 : vector<8x128xf32>
    %cst_61 = arith.constant 1.000000e+00 : f32
    %292 = vector.broadcast %cst_61 : f32 to vector<8x128xf32>
    %293 = arith.addf %292, %291 : vector<8x128xf32>
    %294 = arith.divf %292, %293 : vector<8x128xf32>
    %295 = vector.extract_strided_slice %294 {offsets = [0, 0], sizes = [8, 32], strides = [1, 1]} : vector<8x128xf32> to vector<8x32xf32>
    %296 = vector.extract_strided_slice %294 {offsets = [0, 32], sizes = [8, 32], strides = [1, 1]} : vector<8x128xf32> to vector<8x32xf32>
    %297 = vector.extract_strided_slice %294 {offsets = [0, 96], sizes = [8, 32], strides = [1, 1]} : vector<8x128xf32> to vector<8x32xf32>
    %298 = vector.extract_strided_slice %289 {offsets = [0, 64], sizes = [8, 32], strides = [1, 1]} : vector<8x128xf32> to vector<8x32xf32>
    %299 = math.tanh %298 : vector<8x32xf32>
    %300 = arith.mulf %296, %282 : vector<8x32xf32>
    %301 = arith.mulf %295, %299 : vector<8x32xf32>
    %302 = arith.addf %300, %301 : vector<8x32xf32>
    %303 = math.tanh %302 : vector<8x32xf32>
    %304 = arith.mulf %297, %303 : vector<8x32xf32>
    %c0_62 = arith.constant 0 : index
    %c0_63 = arith.constant 0 : index
    %305 = vector.load %arg7[%c0_62, %c0_63] : memref<32x8xf32, #tpu.memory_space<vmem>>, vector<32x8xf32>
    %cst_64 = arith.constant dense<0.000000e+00> : vector<8x8xf32>
    %306 = tpu.matmul %304, %305, %cst_64 {dimension_numbers = #tpu.dot_dimension_numbers<[1], [0], [0], [1], [0, 0, 1, 1], [], []>} : vector<8x32xf32>, vector<32x8xf32>, vector<8x8xf32> -> vector<8x8xf32>
    %c0_65 = arith.constant 0 : index
    %c0_66 = arith.constant 0 : index
    %307 = vector.load %arg8[%c0_65, %c0_66] : memref<1x8xf32, #tpu.memory_space<vmem>>, vector<1x8xf32>
    %308 = vector.broadcast %307 : vector<1x8xf32> to vector<8x8xf32>
    %309 = arith.addf %306, %308 : vector<8x8xf32>
    %c0_67 = arith.constant 0 : index
    %c0_68 = arith.constant 0 : index
    %310 = vector.load %arg9[%c0_67, %c0_68] : memref<8x8xf32, #tpu.memory_space<vmem>>, vector<8x8xf32>
    tpu.vector_store %arg9[%c0_67, %c0_68], %309 {strides = array<i32>} : memref<8x8xf32, #tpu.memory_space<vmem>>, vector<8x8xf32>,
    return
  }
}

</mosaic_0001>

<llo_original>
// kernel: lstm_class_forward.1
$region0: #{lstm_class_forward.1}
  #allocation0 [shape = 'u32[]', space=smem, size = 0x4, offset = 0x4, fixed_abs, tag = 'smem constant byte address 0x4 - core index']
  #allocation1 [shape = 'u32[144,128]{1,0:T(1,128)}', space=vmem, size = 0x12000, scoped, tag = 'internal scratch']
  #allocation2 [shape = 'f32[64,128]{1,0:T(8,128)}', space=vmem, size = 0x8000, scoped, tag = 'scratch operand']
  %s0 = inlined_call_operand.vmem [shape: f32[64,16], index: 0, kind: input, shape index: {}]
  %s1 = inlined_call_operand.vmem [shape: f32[16,128], index: 1, kind: input, shape index: {}]
  %s2 = inlined_call_operand.vmem [shape: f32[32,128], index: 2, kind: input, shape index: {}]
  %s3 = inlined_call_operand.vmem [shape: f32[1,128], index: 3, kind: input, shape index: {}]
  %s4 = inlined_call_operand.vmem [shape: f32[32,128], index: 4, kind: input, shape index: {}]
  %s5 = inlined_call_operand.vmem [shape: f32[32,128], index: 5, kind: input, shape index: {}]
  %s6 = inlined_call_operand.vmem [shape: f32[1,128], index: 6, kind: input, shape index: {}]
  %s7 = inlined_call_operand.vmem [shape: f32[32,8], index: 7, kind: input, shape index: {}]
  %s8 = inlined_call_operand.vmem [shape: f32[1,8], index: 8, kind: input, shape index: {}]
  %s9 = inlined_call_operand.vmem [shape: f32[8,8], index: 9, kind: output, shape index: {}]
  %s10 = sld [smem:[#allocation0]]
  $region46: #{lstm_class_forward.1} parent=0
    _
  %s12 = ssub.s32 1, %s10
  %s13 = scalar_select 0, %s12, %s10
  // Predicated region
  $region2: #{lstm_class_forward.1} parent=0 // pred_check
    _
  $region3: #{lstm_class_forward.1} parent=0 // pred_check_branch
    %15 = sbr.rel (0) target = $region5
  $region4: #{lstm_class_forward.1} parent=0 // pred_region
    _
  $region5: #{lstm_class_forward.1} parent=0 // pred_fallthru
    _
  // Predicated region
  $region6: #{lstm_class_forward.1} parent=0 // pred_check
    _
  $region7: #{lstm_class_forward.1} parent=0 // pred_check_branch
    %17 = sbr.rel (0) target = $region9
  $region8: #{lstm_class_forward.1} parent=0 // pred_region
    _
  $region9: #{lstm_class_forward.1} parent=0 // pred_fallthru
    _
  // Predicated region
  $region10: #{lstm_class_forward.1} parent=0 // pred_check
    _
  $region11: #{lstm_class_forward.1} parent=0 // pred_check_branch
    %19 = sbr.rel (0) target = $region13
  $region12: #{lstm_class_forward.1} parent=0 // pred_region
    _
  $region13: #{lstm_class_forward.1} parent=0 // pred_fallthru
    _
  // Predicated region
  $region14: #{lstm_class_forward.1} parent=0 // pred_check
    _
  $region15: #{lstm_class_forward.1} parent=0 // pred_check_branch
    %21 = sbr.rel (0) target = $region17
  $region16: #{lstm_class_forward.1} parent=0 // pred_region
    _
  $region17: #{lstm_class_forward.1} parent=0 // pred_fallthru
    _
  // Predicated region
  $region18: #{lstm_class_forward.1} parent=0 // pred_check
    _
  $region19: #{lstm_class_forward.1} parent=0 // pred_check_branch
    %23 = sbr.rel (0) target = $region21
  $region20: #{lstm_class_forward.1} parent=0 // pred_region
    _
  $region21: #{lstm_class_forward.1} parent=0 // pred_fallthru
    _
  // Predicated region
  $region22: #{lstm_class_forward.1} parent=0 // pred_check
    _
  $region23: #{lstm_class_forward.1} parent=0 // pred_check_branch
    %25 = sbr.rel (0) target = $region25
  $region24: #{lstm_class_forward.1} parent=0 // pred_region
    _
  $region25: #{lstm_class_forward.1} parent=0 // pred_fallthru
    _
  // Predicated region
  $region26: #{lstm_class_forward.1} parent=0 // pred_check
    _
  $region27: #{lstm_class_forward.1} parent=0 // pred_check_branch
    %27 = sbr.rel (0) target = $region29
  $region28: #{lstm_class_forward.1} parent=0 // pred_region
    _
  $region29: #{lstm_class_forward.1} parent=0 // pred_fallthru
    _
  // Predicated region
  $region30: #{lstm_class_forward.1} parent=0 // pred_check
    _
  $region31: #{lstm_class_forward.1} parent=0 // pred_check_branch
    %29 = sbr.rel (0) target = $region33
  $region32: #{lstm_class_forward.1} parent=0 // pred_region
    _
  $region33: #{lstm_class_forward.1} parent=0 // pred_fallthru
    _
  // Predicated region
  $region34: #{lstm_class_forward.1} parent=0 // pred_check
    _
  $region35: #{lstm_class_forward.1} parent=0 // pred_check_branch
    %31 = sbr.rel (0) target = $region37
  $region36: #{lstm_class_forward.1} parent=0 // pred_region
    _
  $region37: #{lstm_class_forward.1} parent=0 // pred_fallthru
    _
  %v32 = vld [vmem:[%s1] sm:$0xff]
  %v33 = vld [vmem:[%s1 + $0x8] sm:$0xff]
  %v34 = vld [vmem:[%s3] sm:$0x1]
  %v35 = vld [vmem:[%s0] sm:$0xff]
  %v36 = vld [vmem:[%s0 + $0x8] sm:$0xff]
  %v37 = vld [vmem:[%s0 + $0x10] sm:$0xff]
  %v38 = vld [vmem:[%s0 + $0x18] sm:$0xff]
  %v39 = vld [vmem:[%s0 + $0x20] sm:$0xff]
  %v40 = vld [vmem:[%s0 + $0x28] sm:$0xff]
  %v41 = vld [vmem:[%s0 + $0x30] sm:$0xff]
  %v42 = vld [vmem:[%s0 + $0x38] sm:$0xff]
  %v44 = vlaneseq
  %v45 = vshrl.u32 %v44, 7
  %v46 = vsub.s32 0, %v45
  %v47 = vrot.slane %v34, %v46
  %vm49 = vcmask 130048
  %v51 = vsel %vm49, %v35, 0
  %v54 = vsel %vm49, %v36, 0
  %v57 = vsel %vm49, %v37, 0
  %v60 = vsel %vm49, %v38, 0
  %v63 = vsel %vm49, %v39, 0
  %v66 = vsel %vm49, %v40, 0
  %v69 = vsel %vm49, %v41, 0
  %v72 = vsel %vm49, %v42, 0
  %74 = vmatprep.subr.mxu0 0.0
  %75 = vmatpush1.msra.mxu0 %v32
  %76 = vmatprep.subr.mxu0 0.0
  %77 = vmatpush1.msra.mxu0 %v33
  %78 = vmatprep.subr.mxu0 0.0
  %79 = vmatpush1.msra.mxu0 0.0
  %80 = vmatprep.subr.mxu0 0.0
  %81 = vmatpush1.msra.mxu0 0.0
  %82 = vmatprep.subr.mxu0 0.0
  %83 = vmatpush1.msra.mxu0 0.0
  %84 = vmatprep.subr.mxu0 0.0
  %85 = vmatpush1.msra.mxu0 0.0
  %86 = vmatprep.subr.mxu0 0.0
  %87 = vmatpush1.msra.mxu0 0.0
  %88 = vmatprep.subr.mxu0 0.0
  %89 = vmatpush1.msra.mxu0 0.0
  %90 = vmatprep.subr.mxu0 0.0
  %91 = vmatpush1.msra.mxu0 0.0
  %92 = vmatprep.subr.mxu0 0.0
  %93 = vmatpush1.msra.mxu0 0.0
  %94 = vmatprep.subr.mxu0 0.0
  %95 = vmatpush1.msra.mxu0 0.0
  %96 = vmatprep.subr.mxu0 0.0
  %97 = vmatpush1.msra.mxu0 0.0
  %98 = vmatprep.subr.mxu0 0.0
  %99 = vmatpush1.msra.mxu0 0.0
  %100 = vmatprep.subr.mxu0 0.0
  %101 = vmatpush1.msra.mxu0 0.0
  %102 = vmatprep.subr.mxu0 0.0
  %103 = vmatpush1.msra.mxu0 0.0
  %104 = vmatprep.subr.mxu0 0.0
  %105 = vmatpush1.msra.mxu0 0.0
  %106 = vmatprep.subr.mxu0 0.0
  %107 = vmatpush1.msra.mxu0 0.0
  %108 = vmatprep.subr.mxu0 0.0
  %109 = vmatpush1.msra.mxu0 0.0
  %110 = vmatprep.subr.mxu0 0.0
  %111 = vmatpush1.msra.mxu0 0.0
  %112 = vmatprep.subr.mxu0 0.0
  %113 = vmatpush1.msra.mxu0 0.0
  %114 = vmatprep.subr.mxu0 0.0
  %115 = vmatpush1.msra.mxu0 0.0
  %116 = vmatprep.subr.mxu0 0.0
  %117 = vmatpush1.msra.mxu0 0.0
  %118 = vmatprep.subr.mxu0 0.0
  %119 = vmatpush1.msra.mxu0 0.0
  %120 = vmatprep.subr.mxu0 0.0
  %121 = vmatpush1.msra.mxu0 0.0
  %122 = vmatprep.subr.mxu0 0.0
  %123 = vmatpush1.msra.mxu0 0.0
  %124 = vmatprep.subr.mxu0 0.0
  %125 = vmatpush1.msra.mxu0 0.0
  %126 = vmatprep.subr.mxu0 0.0
  %127 = vmatpush1.msra.mxu0 0.0
  %128 = vmatprep.subr.mxu0 0.0
  %129 = vmatpush1.msra.mxu0 0.0
  %130 = vmatprep.subr.mxu0 0.0
  %131 = vmatpush1.msra.mxu0 0.0
  %132 = vmatprep.subr.mxu0 0.0
  %133 = vmatpush1.msra.mxu0 0.0
  %134 = vmatprep.subr.mxu0 0.0
  %135 = vmatpush1.msra.mxu0 0.0
  %136 = vmatprep.subr.mxu0 0.0
  %137 = vmatpush1.msra.mxu0 0.0
  %138 = vmatprep.mubr.f32.mxu0 0.0
  %139 = vmatmul.mubr.f32.gmra.mrb[0].mxu0 %v51
  %v140 = vpop.f32.mrb[0].mxu0
  %v141 = vadd.f32 %v47, %v140
  %v142 = vpop.f32.mrb[0].mxu0
  %143 = vmatprep.mubr.f32.mxu0 0.0
  %144 = vmatmul.mubr.f32.gmra.mrb[0].mxu0 %v54
  %v145 = vpop.f32.mrb[0].mxu0
  %v146 = vadd.f32 %v47, %v145
  %v147 = vpop.f32.mrb[0].mxu0
  %148 = vmatprep.mubr.f32.mxu0 0.0
  %149 = vmatmul.mubr.f32.gmra.mrb[0].mxu0 %v57
  %v150 = vpop.f32.mrb[0].mxu0
  %v151 = vadd.f32 %v47, %v150
  %v152 = vpop.f32.mrb[0].mxu0
  %153 = vmatprep.mubr.f32.mxu0 0.0
  %154 = vmatmul.mubr.f32.gmra.mrb[0].mxu0 %v60
  %v155 = vpop.f32.mrb[0].mxu0
  %v156 = vadd.f32 %v47, %v155
  %v157 = vpop.f32.mrb[0].mxu0
  %158 = vmatprep.mubr.f32.mxu0 0.0
  %159 = vmatmul.mubr.f32.gmra.mrb[0].mxu0 %v63
  %v160 = vpop.f32.mrb[0].mxu0
  %v161 = vadd.f32 %v47, %v160
  %v162 = vpop.f32.mrb[0].mxu0
  %163 = vmatprep.mubr.f32.mxu0 0.0
  %164 = vmatmul.mubr.f32.gmra.mrb[0].mxu0 %v66
  %v165 = vpop.f32.mrb[0].mxu0
  %v166 = vadd.f32 %v47, %v165
  %v167 = vpop.f32.mrb[0].mxu0
  %168 = vmatprep.mubr.f32.mxu0 0.0
  %169 = vmatmul.mubr.f32.gmra.mrb[0].mxu0 %v69
  %v170 = vpop.f32.mrb[0].mxu0
  %v171 = vadd.f32 %v47, %v170
  %v172 = vpop.f32.mrb[0].mxu0
  %173 = vmatprep.mubr.f32.mxu0 0.0
  %174 = vmatmul.mubr.f32.gmra.mrb[0].mxu0 %v72
  %v175 = vpop.f32.mrb[0].mxu0
  %v176 = vadd.f32 %v47, %v175
  %v177 = vpop.f32.mrb[0].mxu0
  %178 = vdwg.mxu0
  %179 = vst [vmem:[#allocation2] sm:$0xff] %v141
  %180 = vst [vmem:[#allocation2 + $0x8] sm:$0xff] %v146
  %181 = vst [vmem:[#allocation2 + $0x10] sm:$0xff] %v151
  %182 = vst [vmem:[#allocation2 + $0x18] sm:$0xff] %v156
  %183 = vst [vmem:[#allocation2 + $0x20] sm:$0xff] %v161
  %184 = vst [vmem:[#allocation2 + $0x28] sm:$0xff] %v166
  %185 = vst [vmem:[#allocation2 + $0x30] sm:$0xff] %v171
  %186 = vst [vmem:[#allocation2 + $0x38] sm:$0xff] %v176
  %v187 = vld [vmem:[%s2] sm:$0xff]
  %v188 = vld [vmem:[%s2 + $0x8] sm:$0xff]
  %v189 = vld [vmem:[%s2 + $0x10] sm:$0xff]
  %v190 = vld [vmem:[%s2 + $0x18] sm:$0xff]
  %v191 = vld [vmem:[%s5] sm:$0xff]
  %v192 = vld [vmem:[%s5 + $0x8] sm:$0xff]
  %v193 = vld [vmem:[%s5 + $0x10] sm:$0xff]
  %v194 = vld [vmem:[%s5 + $0x18] sm:$0xff]
  %v195 = vld [vmem:[%s4] sm:$0xff]
  %v196 = vld [vmem:[%s4 + $0x8] sm:$0xff]
  %v197 = vld [vmem:[%s4 + $0x10] sm:$0xff]
  %v198 = vld [vmem:[%s4 + $0x18] sm:$0xff]
  %v199 = vld [vmem:[%s6] sm:$0x1]
  %v200 = vld [vmem:[#allocation2] sm:$0xff]
  %v201 = vxor.u32 %v200, 2147483648
  %v202 = vmul.f32 %v201, 1.442695
  %v203 = vpow.pop %v202
  %v204 = vadd.f32 %v203, 1.0
  %v205 = vrcp.pop %v204
  %v206 = vmul.f32 1.0, %v205
  %v207 = vtanh.pop %v200
  %209 = vrot.lane.b32.xlu0 %v207, 64
  %v210 = vpop.permute.xlu0 %209
  %v212 = vmul.f32 %v206, %v210
  %v213 = vtanh.pop %v212
  %215 = vrot.lane.b32.xlu0 %v213, 96
  %v216 = vpop.permute.xlu0 %215
  %v218 = vmul.f32 %v206, %v216
  %v219 = vld [vmem:[#allocation2 + $0x8] sm:$0xff]
  %221 = vrot.lane.b32.xlu0 %v218, 32
  %v222 = vpop.permute.xlu0 %221
  %vm223 = vcmask 261120
  %v224 = vsel %vm223, %v222, 0
  %226 = vmatprep.subr.mxu0 0.0
  %227 = vmatpush1.msra.mxu0 %v187
  %228 = vmatprep.subr.mxu0 0.0
  %229 = vmatpush1.msra.mxu0 %v188
  %230 = vmatprep.subr.mxu0 0.0
  %231 = vmatpush1.msra.mxu0 %v189
  %232 = vmatprep.subr.mxu0 0.0
  %233 = vmatpush1.msra.mxu0 %v190
  %234 = vmatprep.subr.mxu0 0.0
  %235 = vmatpush1.msra.mxu0 0.0
  %236 = vmatprep.subr.mxu0 0.0
  %237 = vmatpush1.msra.mxu0 0.0
  %238 = vmatprep.subr.mxu0 0.0
  %239 = vmatpush1.msra.mxu0 0.0
  %240 = vmatprep.subr.mxu0 0.0
  %241 = vmatpush1.msra.mxu0 0.0
  %242 = vmatprep.subr.mxu0 0.0
  %243 = vmatpush1.msra.mxu0 0.0
  %244 = vmatprep.subr.mxu0 0.0
  %245 = vmatpush1.msra.mxu0 0.0
  %246 = vmatprep.subr.mxu0 0.0
  %247 = vmatpush1.msra.mxu0 0.0
  %248 = vmatprep.subr.mxu0 0.0
  %249 = vmatpush1.msra.mxu0 0.0
  %250 = vmatprep.subr.mxu0 0.0
  %251 = vmatpush1.msra.mxu0 0.0
  %252 = vmatprep.subr.mxu0 0.0
  %253 = vmatpush1.msra.mxu0 0.0
  %254 = vmatprep.subr.mxu0 0.0
  %255 = vmatpush1.msra.mxu0 0.0
  %256 = vmatprep.subr.mxu0 0.0
  %257 = vmatpush1.msra.mxu0 0.0
  %258 = vmatprep.subr.mxu0 0.0
  %259 = vmatpush1.msra.mxu0 0.0
  %260 = vmatprep.subr.mxu0 0.0
  %261 = vmatpush1.msra.mxu0 0.0
  %262 = vmatprep.subr.mxu0 0.0
  %263 = vmatpush1.msra.mxu0 0.0
  %264 = vmatprep.subr.mxu0 0.0
  %265 = vmatpush1.msra.mxu0 0.0
  %266 = vmatprep.subr.mxu0 0.0
  %267 = vmatpush1.msra.mxu0 0.0
  %268 = vmatprep.subr.mxu0 0.0
  %269 = vmatpush1.msra.mxu0 0.0
  %270 = vmatprep.subr.mxu0 0.0
  %271 = vmatpush1.msra.mxu0 0.0
  %272 = vmatprep.subr.mxu0 0.0
  %273 = vmatpush1.msra.mxu0 0.0
  %274 = vmatprep.subr.mxu0 0.0
  %275 = vmatpush1.msra.mxu0 0.0
  %276 = vmatprep.subr.mxu0 0.0
  %277 = vmatpush1.msra.mxu0 0.0
  %278 = vmatprep.subr.mxu0 0.0
  %279 = vmatpush1.msra.mxu0 0.0
  %280 = vmatprep.subr.mxu0 0.0
  %281 = vmatpush1.msra.mxu0 0.0
  %282 = vmatprep.subr.mxu0 0.0
  %283 = vmatpush1.msra.mxu0 0.0
  %284 = vmatprep.subr.mxu0 0.0
  %285 = vmatpush1.msra.mxu0 0.0
  %286 = vmatprep.subr.mxu0 0.0
  %287 = vmatpush1.msra.mxu0 0.0
  %288 = vmatprep.subr.mxu0 0.0
  %289 = vmatpush1.msra.mxu0 0.0
  %290 = vmatprep.mubr.f32.mxu0 0.0
  %291 = vmatmul.mubr.f32.gmra.mrb[0].mxu0 %v224
  %v292 = vpop.f32.mrb[0].mxu0
  %v293 = vadd.f32 0.0, %v292
  %v294 = vpop.f32.mrb[0].mxu0
  %295 = vdwg.mxu0
  %v296 = vadd.f32 %v219, %v293
  %v297 = vxor.u32 %v296, 2147483648
  %v298 = vmul.f32 %v297, 1.442695
  %v299 = vpow.pop %v298
  %v300 = vadd.f32 %v299, 1.0
  %v301 = vrcp.pop %v300
  %v302 = vmul.f32 1.0, %v301
  %v303 = vtanh.pop %v296
  %305 = vrot.lane.b32.xlu0 %v212, 32
  %v306 = vpop.permute.xlu0 %305
  %v308 = vmul.f32 %v302, %v306
  %310 = vrot.lane.b32.xlu0 %v303, 64
  %v311 = vpop.permute.xlu0 %310
  %v313 = vmul.f32 %v302, %v311
  %315 = vrot.lane.b32.xlu0 %v313, 32
  %v316 = vpop.permute.xlu0 %315
  %v318 = vadd.f32 %v308, %v316
  %v319 = vtanh.pop %v318
  %321 = vrot.lane.b32.xlu0 %v319, 64
  %v322 = vpop.permute.xlu0 %321
  %v324 = vmul.f32 %v302, %v322
  %v326 = vlaneseq
  %v327 = vshrl.u32 %v326, 7
  %v328 = vsub.s32 0, %v327
  %v329 = vrot.slane %v199, %v328
  %331 = vmatprep.subr.mxu0 0.0
  %332 = vmatpush1.msra.mxu0 %v195
  %333 = vmatprep.subr.mxu0 0.0
  %334 = vmatpush1.msra.mxu0 %v196
  %335 = vmatprep.subr.mxu0 0.0
  %336 = vmatpush1.msra.mxu0 %v197
  %337 = vmatprep.subr.mxu0 0.0
  %338 = vmatpush1.msra.mxu0 %v198
  %339 = vmatprep.subr.mxu0 0.0
  %340 = vmatpush1.msra.mxu0 0.0
  %341 = vmatprep.subr.mxu0 0.0
  %342 = vmatpush1.msra.mxu0 0.0
  %343 = vmatprep.subr.mxu0 0.0
  %344 = vmatpush1.msra.mxu0 0.0
  %345 = vmatprep.subr.mxu0 0.0
  %346 = vmatpush1.msra.mxu0 0.0
  %347 = vmatprep.subr.mxu0 0.0
  %348 = vmatpush1.msra.mxu0 0.0
  %349 = vmatprep.subr.mxu0 0.0
  %350 = vmatpush1.msra.mxu0 0.0
  %351 = vmatprep.subr.mxu0 0.0
  %352 = vmatpush1.msra.mxu0 0.0
  %353 = vmatprep.subr.mxu0 0.0
  %354 = vmatpush1.msra.mxu0 0.0
  %355 = vmatprep.subr.mxu0 0.0
  %356 = vmatpush1.msra.mxu0 0.0
  %357 = vmatprep.subr.mxu0 0.0
  %358 = vmatpush1.msra.mxu0 0.0
  %359 = vmatprep.subr.mxu0 0.0
  %360 = vmatpush1.msra.mxu0 0.0
  %361 = vmatprep.subr.mxu0 0.0
  %362 = vmatpush1.msra.mxu0 0.0
  %363 = vmatprep.subr.mxu0 0.0
  %364 = vmatpush1.msra.mxu0 0.0
  %365 = vmatprep.subr.mxu0 0.0
  %366 = vmatpush1.msra.mxu0 0.0
  %367 = vmatprep.subr.mxu0 0.0
  %368 = vmatpush1.msra.mxu0 0.0
  %369 = vmatprep.subr.mxu0 0.0
  %370 = vmatpush1.msra.mxu0 0.0
  %371 = vmatprep.subr.mxu0 0.0
  %372 = vmatpush1.msra.mxu0 0.0
  %373 = vmatprep.subr.mxu0 0.0
  %374 = vmatpush1.msra.mxu0 0.0
  %375 = vmatprep.subr.mxu0 0.0
  %376 = vmatpush1.msra.mxu0 0.0
  %377 = vmatprep.subr.mxu0 0.0
  %378 = vmatpush1.msra.mxu0 0.0
  %379 = vmatprep.subr.mxu0 0.0
  %380 = vmatpush1.msra.mxu0 0.0
  %381 = vmatprep.subr.mxu0 0.0
  %382 = vmatpush1.msra.mxu0 0.0
  %383 = vmatprep.subr.mxu0 0.0
  %384 = vmatpush1.msra.mxu0 0.0
  %385 = vmatprep.subr.mxu0 0.0
  %386 = vmatpush1.msra.mxu0 0.0
  %387 = vmatprep.subr.mxu0 0.0
  %388 = vmatpush1.msra.mxu0 0.0
  %389 = vmatprep.subr.mxu0 0.0
  %390 = vmatpush1.msra.mxu0 0.0
  %391 = vmatprep.subr.mxu0 0.0
  %392 = vmatpush1.msra.mxu0 0.0
  %393 = vmatprep.subr.mxu0 0.0
  %394 = vmatpush1.msra.mxu0 0.0
  %395 = vmatprep.mubr.f32.mxu0 0.0
  %396 = vmatmul.mubr.f32.gmra.mrb[0].mxu0 %v224
  %v397 = vpop.f32.mrb[0].mxu0
  %v398 = vadd.f32 %v329, %v397
  %v399 = vpop.f32.mrb[0].mxu0
  %400 = vdwg.mxu0
  %v401 = vxor.u32 %v398, 2147483648
  %v402 = vmul.f32 %v401, 1.442695
  %v403 = vpow.pop %v402
  %v404 = vadd.f32 %v403, 1.0
  %v405 = vrcp.pop %v404
  %v406 = vmul.f32 1.0, %v405
  %v407 = vtanh.pop %v398
  %409 = vrot.lane.b32.xlu0 %v407, 64
  %v410 = vpop.permute.xlu0 %409
  %v412 = vmul.f32 %v406, %v410
  %v413 = vtanh.pop %v412
  %415 = vrot.lane.b32.xlu0 %v413, 96
  %v416 = vpop.permute.xlu0 %415
  %v418 = vmul.f32 %v406, %v416
  %v419 = vld [vmem:[#allocation2 + $0x10] sm:$0xff]
  %421 = vrot.lane.b32.xlu0 %v324, 32
  %v422 = vpop.permute.xlu0 %421
  %v423 = vsel %vm223, %v422, 0
  %425 = vmatprep.subr.mxu0 0.0
  %426 = vmatpush1.msra.mxu0 %v187
  %427 = vmatprep.subr.mxu0 0.0
  %428 = vmatpush1.msra.mxu0 %v188
  %429 = vmatprep.subr.mxu0 0.0
  %430 = vmatpush1.msra.mxu0 %v189
  %431 = vmatprep.subr.mxu0 0.0
  %432 = vmatpush1.msra.mxu0 %v190
  %433 = vmatprep.subr.mxu0 0.0
  %434 = vmatpush1.msra.mxu0 0.0
  %435 = vmatprep.subr.mxu0 0.0
  %436 = vmatpush1.msra.mxu0 0.0
  %437 = vmatprep.subr.mxu0 0.0
  %438 = vmatpush1.msra.mxu0 0.0
  %439 = vmatprep.subr.mxu0 0.0
  %440 = vmatpush1.msra.mxu0 0.0
  %441 = vmatprep.subr.mxu0 0.0
  %442 = vmatpush1.msra.mxu0 0.0
  %443 = vmatprep.subr.mxu0 0.0
  %444 = vmatpush1.msra.mxu0 0.0
  %445 = vmatprep.subr.mxu0 0.0
  %446 = vmatpush1.msra.mxu0 0.0
  %447 = vmatprep.subr.mxu0 0.0
  %448 = vmatpush1.msra.mxu0 0.0
  %449 = vmatprep.subr.mxu0 0.0
  %450 = vmatpush1.msra.mxu0 0.0
  %451 = vmatprep.subr.mxu0 0.0
  %452 = vmatpush1.msra.mxu0 0.0
  %453 = vmatprep.subr.mxu0 0.0
  %454 = vmatpush1.msra.mxu0 0.0
  %455 = vmatprep.subr.mxu0 0.0
  %456 = vmatpush1.msra.mxu0 0.0
  %457 = vmatprep.subr.mxu0 0.0
  %458 = vmatpush1.msra.mxu0 0.0
  %459 = vmatprep.subr.mxu0 0.0
  %460 = vmatpush1.msra.mxu0 0.0
  %461 = vmatprep.subr.mxu0 0.0
  %462 = vmatpush1.msra.mxu0 0.0
  %463 = vmatprep.subr.mxu0 0.0
  %464 = vmatpush1.msra.mxu0 0.0
  %465 = vmatprep.subr.mxu0 0.0
  %466 = vmatpush1.msra.mxu0 0.0
  %467 = vmatprep.subr.mxu0 0.0
  %468 = vmatpush1.msra.mxu0 0.0
  %469 = vmatprep.subr.mxu0 0.0
  %470 = vmatpush1.msra.mxu0 0.0
  %471 = vmatprep.subr.mxu0 0.0
  %472 = vmatpush1.msra.mxu0 0.0
  %473 = vmatprep.subr.mxu0 0.0
  %474 = vmatpush1.msra.mxu0 0.0
  %475 = vmatprep.subr.mxu0 0.0
  %476 = vmatpush1.msra.mxu0 0.0
  %477 = vmatprep.subr.mxu0 0.0
  %478 = vmatpush1.msra.mxu0 0.0
  %479 = vmatprep.subr.mxu0 0.0
  %480 = vmatpush1.msra.mxu0 0.0
  %481 = vmatprep.subr.mxu0 0.0
  %482 = vmatpush1.msra.mxu0 0.0
  %483 = vmatprep.subr.mxu0 0.0
  %484 = vmatpush1.msra.mxu0 0.0
  %485 = vmatprep.subr.mxu0 0.0
  %486 = vmatpush1.msra.mxu0 0.0
  %487 = vmatprep.subr.mxu0 0.0
  %488 = vmatpush1.msra.mxu0 0.0
  %489 = vmatprep.mubr.f32.mxu0 0.0
  %490 = vmatmul.mubr.f32.gmra.mrb[0].mxu0 %v423
  %v491 = vpop.f32.mrb[0].mxu0
  %v492 = vadd.f32 0.0, %v491
  %v493 = vpop.f32.mrb[0].mxu0
  %494 = vdwg.mxu0
  %v495 = vadd.f32 %v419, %v492
  %v496 = vxor.u32 %v495, 2147483648
  %v497 = vmul.f32 %v496, 1.442695
  %v498 = vpow.pop %v497
  %v499 = vadd.f32 %v498, 1.0
  %v500 = vrcp.pop %v499
  %v501 = vmul.f32 1.0, %v500
  %v502 = vtanh.pop %v495
  %v503 = vmul.f32 %v501, %v318
  %505 = vrot.lane.b32.xlu0 %v502, 64
  %v506 = vpop.permute.xlu0 %505
  %v508 = vmul.f32 %v501, %v506
  %510 = vrot.lane.b32.xlu0 %v508, 32
  %v511 = vpop.permute.xlu0 %510
  %v513 = vadd.f32 %v503, %v511
  %v514 = vtanh.pop %v513
  %516 = vrot.lane.b32.xlu0 %v514, 64
  %v517 = vpop.permute.xlu0 %516
  %v519 = vmul.f32 %v501, %v517
  %520 = vmatprep.subr.mxu0 0.0
  %521 = vmatpush1.msra.mxu0 %v195
  %522 = vmatprep.subr.mxu0 0.0
  %523 = vmatpush1.msra.mxu0 %v196
  %524 = vmatprep.subr.mxu0 0.0
  %525 = vmatpush1.msra.mxu0 %v197
  %526 = vmatprep.subr.mxu0 0.0
  %527 = vmatpush1.msra.mxu0 %v198
  %528 = vmatprep.subr.mxu0 0.0
  %529 = vmatpush1.msra.mxu0 0.0
  %530 = vmatprep.subr.mxu0 0.0
  %531 = vmatpush1.msra.mxu0 0.0
  %532 = vmatprep.subr.mxu0 0.0
  %533 = vmatpush1.msra.mxu0 0.0
  %534 = vmatprep.subr.mxu0 0.0
  %535 = vmatpush1.msra.mxu0 0.0
  %536 = vmatprep.subr.mxu0 0.0
  %537 = vmatpush1.msra.mxu0 0.0
  %538 = vmatprep.subr.mxu0 0.0
  %539 = vmatpush1.msra.mxu0 0.0
  %540 = vmatprep.subr.mxu0 0.0
  %541 = vmatpush1.msra.mxu0 0.0
  %542 = vmatprep.subr.mxu0 0.0
  %543 = vmatpush1.msra.mxu0 0.0
  %544 = vmatprep.subr.mxu0 0.0
  %545 = vmatpush1.msra.mxu0 0.0
  %546 = vmatprep.subr.mxu0 0.0
  %547 = vmatpush1.msra.mxu0 0.0
  %548 = vmatprep.subr.mxu0 0.0
  %549 = vmatpush1.msra.mxu0 0.0
  %550 = vmatprep.subr.mxu0 0.0
  %551 = vmatpush1.msra.mxu0 0.0
  %552 = vmatprep.subr.mxu0 0.0
  %553 = vmatpush1.msra.mxu0 0.0
  %554 = vmatprep.subr.mxu0 0.0
  %555 = vmatpush1.msra.mxu0 0.0
  %556 = vmatprep.subr.mxu0 0.0
  %557 = vmatpush1.msra.mxu0 0.0
  %558 = vmatprep.subr.mxu0 0.0
  %559 = vmatpush1.msra.mxu0 0.0
  %560 = vmatprep.subr.mxu0 0.0
  %561 = vmatpush1.msra.mxu0 0.0
  %562 = vmatprep.subr.mxu0 0.0
  %563 = vmatpush1.msra.mxu0 0.0
  %564 = vmatprep.subr.mxu0 0.0
  %565 = vmatpush1.msra.mxu0 0.0
  %566 = vmatprep.subr.mxu0 0.0
  %567 = vmatpush1.msra.mxu0 0.0
  %568 = vmatprep.subr.mxu0 0.0
  %569 = vmatpush1.msra.mxu0 0.0
  %570 = vmatprep.subr.mxu0 0.0
  %571 = vmatpush1.msra.mxu0 0.0
  %572 = vmatprep.subr.mxu0 0.0
  %573 = vmatpush1.msra.mxu0 0.0
  %574 = vmatprep.subr.mxu0 0.0
  %575 = vmatpush1.msra.mxu0 0.0
  %576 = vmatprep.subr.mxu0 0.0
  %577 = vmatpush1.msra.mxu0 0.0
  %578 = vmatprep.subr.mxu0 0.0
  %579 = vmatpush1.msra.mxu0 0.0
  %580 = vmatprep.subr.mxu0 0.0
  %581 = vmatpush1.msra.mxu0 0.0
  %582 = vmatprep.subr.mxu0 0.0
  %583 = vmatpush1.msra.mxu0 0.0
  %584 = vmatprep.mubr.f32.mxu0 0.0
  %585 = vmatmul.mubr.f32.gmra.mrb[0].mxu0 %v423
  %v586 = vpop.f32.mrb[0].mxu0
  %v587 = vadd.f32 %v329, %v586
  %v588 = vpop.f32.mrb[0].mxu0
  %589 = vdwg.mxu0
  %591 = vrot.lane.b32.xlu0 %v418, 32
  %v592 = vpop.permute.xlu0 %591
  %v593 = vsel %vm223, %v592, 0
  %595 = vmatprep.subr.mxu0 0.0
  %596 = vmatpush1.msra.mxu0 %v191
  %597 = vmatprep.subr.mxu0 0.0
  %598 = vmatpush1.msra.mxu0 %v192
  %599 = vmatprep.subr.mxu0 0.0
  %600 = vmatpush1.msra.mxu0 %v193
  %601 = vmatprep.subr.mxu0 0.0
  %602 = vmatpush1.msra.mxu0 %v194
  %603 = vmatprep.subr.mxu0 0.0
  %604 = vmatpush1.msra.mxu0 0.0
  %605 = vmatprep.subr.mxu0 0.0
  %606 = vmatpush1.msra.mxu0 0.0
  %607 = vmatprep.subr.mxu0 0.0
  %608 = vmatpush1.msra.mxu0 0.0
  %609 = vmatprep.subr.mxu0 0.0
  %610 = vmatpush1.msra.mxu0 0.0
  %611 = vmatprep.subr.mxu0 0.0
  %612 = vmatpush1.msra.mxu0 0.0
  %613 = vmatprep.subr.mxu0 0.0
  %614 = vmatpush1.msra.mxu0 0.0
  %615 = vmatprep.subr.mxu0 0.0
  %616 = vmatpush1.msra.mxu0 0.0
  %617 = vmatprep.subr.mxu0 0.0
  %618 = vmatpush1.msra.mxu0 0.0
  %619 = vmatprep.subr.mxu0 0.0
  %620 = vmatpush1.msra.mxu0 0.0
  %621 = vmatprep.subr.mxu0 0.0
  %622 = vmatpush1.msra.mxu0 0.0
  %623 = vmatprep.subr.mxu0 0.0
  %624 = vmatpush1.msra.mxu0 0.0
  %625 = vmatprep.subr.mxu0 0.0
  %626 = vmatpush1.msra.mxu0 0.0
  %627 = vmatprep.subr.mxu0 0.0
  %628 = vmatpush1.msra.mxu0 0.0
  %629 = vmatprep.subr.mxu0 0.0
  %630 = vmatpush1.msra.mxu0 0.0
  %631 = vmatprep.subr.mxu0 0.0
  %632 = vmatpush1.msra.mxu0 0.0
  %633 = vmatprep.subr.mxu0 0.0
  %634 = vmatpush1.msra.mxu0 0.0
  %635 = vmatprep.subr.mxu0 0.0
  %636 = vmatpush1.msra.mxu0 0.0
  %637 = vmatprep.subr.mxu0 0.0
  %638 = vmatpush1.msra.mxu0 0.0
  %639 = vmatprep.subr.mxu0 0.0
  %640 = vmatpush1.msra.mxu0 0.0
  %641 = vmatprep.subr.mxu0 0.0
  %642 = vmatpush1.msra.mxu0 0.0
  %643 = vmatprep.subr.mxu0 0.0
  %644 = vmatpush1.msra.mxu0 0.0
  %645 = vmatprep.subr.mxu0 0.0
  %646 = vmatpush1.msra.mxu0 0.0
  %647 = vmatprep.subr.mxu0 0.0
  %648 = vmatpush1.msra.mxu0 0.0
  %649 = vmatprep.subr.mxu0 0.0
  %650 = vmatpush1.msra.mxu0 0.0
  %651 = vmatprep.subr.mxu0 0.0
  %652 = vmatpush1.msra.mxu0 0.0
  %653 = vmatprep.subr.mxu0 0.0
  %654 = vmatpush1.msra.mxu0 0.0
  %655 = vmatprep.subr.mxu0 0.0
  %656 = vmatpush1.msra.mxu0 0.0
  %657 = vmatprep.subr.mxu0 0.0
  %658 = vmatpush1.msra.mxu0 0.0
  %659 = vmatprep.mubr.f32.mxu0 0.0
  %660 = vmatmul.mubr.f32.gmra.mrb[0].mxu0 %v593
  %v661 = vpop.f32.mrb[0].mxu0
  %v662 = vadd.f32 0.0, %v661
  %v663 = vpop.f32.mrb[0].mxu0
  %664 = vdwg.mxu0
  %v665 = vadd.f32 %v587, %v662
  %v666 = vxor.u32 %v665, 2147483648
  %v667 = vmul.f32 %v666, 1.442695
  %v668 = vpow.pop %v667
  %v669 = vadd.f32 %v668, 1.0
  %v670 = vrcp.pop %v669
  %v671 = vmul.f32 1.0, %v670
  %v672 = vtanh.pop %v665
  %674 = vrot.lane.b32.xlu0 %v412, 32
  %v675 = vpop.permute.xlu0 %674
  %v677 = vmul.f32 %v671, %v675
  %679 = vrot.lane.b32.xlu0 %v672, 64
  %v680 = vpop.permute.xlu0 %679
  %v682 = vmul.f32 %v671, %v680
  %684 = vrot.lane.b32.xlu0 %v682, 32
  %v685 = vpop.permute.xlu0 %684
  %v687 = vadd.f32 %v677, %v685
  %v688 = vtanh.pop %v687
  %690 = vrot.lane.b32.xlu0 %v688, 64
  %v691 = vpop.permute.xlu0 %690
  %v693 = vmul.f32 %v671, %v691
  %v694 = vld [vmem:[#allocation2 + $0x18] sm:$0xff]
  %696 = vrot.lane.b32.xlu0 %v519, 32
  %v697 = vpop.permute.xlu0 %696
  %v698 = vsel %vm223, %v697, 0
  %700 = vmatprep.subr.mxu0 0.0
  %701 = vmatpush1.msra.mxu0 %v187
  %702 = vmatprep.subr.mxu0 0.0
  %703 = vmatpush1.msra.mxu0 %v188
  %704 = vmatprep.subr.mxu0 0.0
  %705 = vmatpush1.msra.mxu0 %v189
  %706 = vmatprep.subr.mxu0 0.0
  %707 = vmatpush1.msra.mxu0 %v190
  %708 = vmatprep.subr.mxu0 0.0
  %709 = vmatpush1.msra.mxu0 0.0
  %710 = vmatprep.subr.mxu0 0.0
  %711 = vmatpush1.msra.mxu0 0.0
  %712 = vmatprep.subr.mxu0 0.0
  %713 = vmatpush1.msra.mxu0 0.0
  %714 = vmatprep.subr.mxu0 0.0
  %715 = vmatpush1.msra.mxu0 0.0
  %716 = vmatprep.subr.mxu0 0.0
  %717 = vmatpush1.msra.mxu0 0.0
  %718 = vmatprep.subr.mxu0 0.0
  %719 = vmatpush1.msra.mxu0 0.0
  %720 = vmatprep.subr.mxu0 0.0
  %721 = vmatpush1.msra.mxu0 0.0
  %722 = vmatprep.subr.mxu0 0.0
  %723 = vmatpush1.msra.mxu0 0.0
  %724 = vmatprep.subr.mxu0 0.0
  %725 = vmatpush1.msra.mxu0 0.0
  %726 = vmatprep.subr.mxu0 0.0
  %727 = vmatpush1.msra.mxu0 0.0
  %728 = vmatprep.subr.mxu0 0.0
  %729 = vmatpush1.msra.mxu0 0.0
  %730 = vmatprep.subr.mxu0 0.0
  %731 = vmatpush1.msra.mxu0 0.0
  %732 = vmatprep.subr.mxu0 0.0
  %733 = vmatpush1.msra.mxu0 0.0
  %734 = vmatprep.subr.mxu0 0.0
  %735 = vmatpush1.msra.mxu0 0.0
  %736 = vmatprep.subr.mxu0 0.0
  %737 = vmatpush1.msra.mxu0 0.0
  %738 = vmatprep.subr.mxu0 0.0
  %739 = vmatpush1.msra.mxu0 0.0
  %740 = vmatprep.subr.mxu0 0.0
  %741 = vmatpush1.msra.mxu0 0.0
  %742 = vmatprep.subr.mxu0 0.0
  %743 = vmatpush1.msra.mxu0 0.0
  %744 = vmatprep.subr.mxu0 0.0
  %745 = vmatpush1.msra.mxu0 0.0
  %746 = vmatprep.subr.mxu0 0.0
  %747 = vmatpush1.msra.mxu0 0.0
  %748 = vmatprep.subr.mxu0 0.0
  %749 = vmatpush1.msra.mxu0 0.0
  %750 = vmatprep.subr.mxu0 0.0
  %751 = vmatpush1.msra.mxu0 0.0
  %752 = vmatprep.subr.mxu0 0.0
  %753 = vmatpush1.msra.mxu0 0.0
  %754 = vmatprep.subr.mxu0 0.0
  %755 = vmatpush1.msra.mxu0 0.0
  %756 = vmatprep.subr.mxu0 0.0
  %757 = vmatpush1.msra.mxu0 0.0
  %758 = vmatprep.subr.mxu0 0.0
  %759 = vmatpush1.msra.mxu0 0.0
  %760 = vmatprep.subr.mxu0 0.0
  %761 = vmatpush1.msra.mxu0 0.0
  %762 = vmatprep.subr.mxu0 0.0
  %763 = vmatpush1.msra.mxu0 0.0
  %764 = vmatprep.mubr.f32.mxu0 0.0
  %765 = vmatmul.mubr.f32.gmra.mrb[0].mxu0 %v698
  %v766 = vpop.f32.mrb[0].mxu0
  %v767 = vadd.f32 0.0, %v766
  %v768 = vpop.f32.mrb[0].mxu0
  %769 = vdwg.mxu0
  %v770 = vadd.f32 %v694, %v767
  %v771 = vxor.u32 %v770, 2147483648
  %v772 = vmul.f32 %v771, 1.442695
  %v773 = vpow.pop %v772
  %v774 = vadd.f32 %v773, 1.0
  %v775 = vrcp.pop %v774
  %v776 = vmul.f32 1.0, %v775
  %v777 = vtanh.pop %v770
  %v778 = vmul.f32 %v776, %v513
  %780 = vrot.lane.b32.xlu0 %v777, 64
  %v781 = vpop.permute.xlu0 %780
  %v783 = vmul.f32 %v776, %v781
  %785 = vrot.lane.b32.xlu0 %v783, 32
  %v786 = vpop.permute.xlu0 %785
  %v788 = vadd.f32 %v778, %v786
  %v789 = vtanh.pop %v788
  %791 = vrot.lane.b32.xlu0 %v789, 64
  %v792 = vpop.permute.xlu0 %791
  %v794 = vmul.f32 %v776, %v792
  %795 = vmatprep.subr.mxu0 0.0
  %796 = vmatpush1.msra.mxu0 %v195
  %797 = vmatprep.subr.mxu0 0.0
  %798 = vmatpush1.msra.mxu0 %v196
  %799 = vmatprep.subr.mxu0 0.0
  %800 = vmatpush1.msra.mxu0 %v197
  %801 = vmatprep.subr.mxu0 0.0
  %802 = vmatpush1.msra.mxu0 %v198
  %803 = vmatprep.subr.mxu0 0.0
  %804 = vmatpush1.msra.mxu0 0.0
  %805 = vmatprep.subr.mxu0 0.0
  %806 = vmatpush1.msra.mxu0 0.0
  %807 = vmatprep.subr.mxu0 0.0
  %808 = vmatpush1.msra.mxu0 0.0
  %809 = vmatprep.subr.mxu0 0.0
  %810 = vmatpush1.msra.mxu0 0.0
  %811 = vmatprep.subr.mxu0 0.0
  %812 = vmatpush1.msra.mxu0 0.0
  %813 = vmatprep.subr.mxu0 0.0
  %814 = vmatpush1.msra.mxu0 0.0
  %815 = vmatprep.subr.mxu0 0.0
  %816 = vmatpush1.msra.mxu0 0.0
  %817 = vmatprep.subr.mxu0 0.0
  %818 = vmatpush1.msra.mxu0 0.0
  %819 = vmatprep.subr.mxu0 0.0
  %820 = vmatpush1.msra.mxu0 0.0
  %821 = vmatprep.subr.mxu0 0.0
  %822 = vmatpush1.msra.mxu0 0.0
  %823 = vmatprep.subr.mxu0 0.0
  %824 = vmatpush1.msra.mxu0 0.0
  %825 = vmatprep.subr.mxu0 0.0
  %826 = vmatpush1.msra.mxu0 0.0
  %827 = vmatprep.subr.mxu0 0.0
  %828 = vmatpush1.msra.mxu0 0.0
  %829 = vmatprep.subr.mxu0 0.0
  %830 = vmatpush1.msra.mxu0 0.0
  %831 = vmatprep.subr.mxu0 0.0
  %832 = vmatpush1.msra.mxu0 0.0
  %833 = vmatprep.subr.mxu0 0.0
  %834 = vmatpush1.msra.mxu0 0.0
  %835 = vmatprep.subr.mxu0 0.0
  %836 = vmatpush1.msra.mxu0 0.0
  %837 = vmatprep.subr.mxu0 0.0
  %838 = vmatpush1.msra.mxu0 0.0
  %839 = vmatprep.subr.mxu0 0.0
  %840 = vmatpush1.msra.mxu0 0.0
  %841 = vmatprep.subr.mxu0 0.0
  %842 = vmatpush1.msra.mxu0 0.0
  %843 = vmatprep.subr.mxu0 0.0
  %844 = vmatpush1.msra.mxu0 0.0
  %845 = vmatprep.subr.mxu0 0.0
  %846 = vmatpush1.msra.mxu0 0.0
  %847 = vmatprep.subr.mxu0 0.0
  %848 = vmatpush1.msra.mxu0 0.0
  %849 = vmatprep.subr.mxu0 0.0
  %850 = vmatpush1.msra.mxu0 0.0
  %851 = vmatprep.subr.mxu0 0.0
  %852 = vmatpush1.msra.mxu0 0.0
  %853 = vmatprep.subr.mxu0 0.0
  %854 = vmatpush1.msra.mxu0 0.0
  %855 = vmatprep.subr.mxu0 0.0
  %856 = vmatpush1.msra.mxu0 0.0
  %857 = vmatprep.subr.mxu0 0.0
  %858 = vmatpush1.msra.mxu0 0.0
  %859 = vmatprep.mubr.f32.mxu0 0.0
  %860 = vmatmul.mubr.f32.gmra.mrb[0].mxu0 %v698
  %v861 = vpop.f32.mrb[0].mxu0
  %v862 = vadd.f32 %v329, %v861
  %v863 = vpop.f32.mrb[0].mxu0
  %864 = vdwg.mxu0
  %866 = vrot.lane.b32.xlu0 %v693, 32
  %v867 = vpop.permute.xlu0 %866
  %v868 = vsel %vm223, %v867, 0
  %870 = vmatprep.subr.mxu0 0.0
  %871 = vmatpush1.msra.mxu0 %v191
  %872 = vmatprep.subr.mxu0 0.0
  %873 = vmatpush1.msra.mxu0 %v192
  %874 = vmatprep.subr.mxu0 0.0
  %875 = vmatpush1.msra.mxu0 %v193
  %876 = vmatprep.subr.mxu0 0.0
  %877 = vmatpush1.msra.mxu0 %v194
  %878 = vmatprep.subr.mxu0 0.0
  %879 = vmatpush1.msra.mxu0 0.0
  %880 = vmatprep.subr.mxu0 0.0
  %881 = vmatpush1.msra.mxu0 0.0
  %882 = vmatprep.subr.mxu0 0.0
  %883 = vmatpush1.msra.mxu0 0.0
  %884 = vmatprep.subr.mxu0 0.0
  %885 = vmatpush1.msra.mxu0 0.0
  %886 = vmatprep.subr.mxu0 0.0
  %887 = vmatpush1.msra.mxu0 0.0
  %888 = vmatprep.subr.mxu0 0.0
  %889 = vmatpush1.msra.mxu0 0.0
  %890 = vmatprep.subr.mxu0 0.0
  %891 = vmatpush1.msra.mxu0 0.0
  %892 = vmatprep.subr.mxu0 0.0
  %893 = vmatpush1.msra.mxu0 0.0
  %894 = vmatprep.subr.mxu0 0.0
  %895 = vmatpush1.msra.mxu0 0.0
  %896 = vmatprep.subr.mxu0 0.0
  %897 = vmatpush1.msra.mxu0 0.0
  %898 = vmatprep.subr.mxu0 0.0
  %899 = vmatpush1.msra.mxu0 0.0
  %900 = vmatprep.subr.mxu0 0.0
  %901 = vmatpush1.msra.mxu0 0.0
  %902 = vmatprep.subr.mxu0 0.0
  %903 = vmatpush1.msra.mxu0 0.0
  %904 = vmatprep.subr.mxu0 0.0
  %905 = vmatpush1.msra.mxu0 0.0
  %906 = vmatprep.subr.mxu0 0.0
  %907 = vmatpush1.msra.mxu0 0.0
  %908 = vmatprep.subr.mxu0 0.0
  %909 = vmatpush1.msra.mxu0 0.0
  %910 = vmatprep.subr.mxu0 0.0
  %911 = vmatpush1.msra.mxu0 0.0
  %912 = vmatprep.subr.mxu0 0.0
  %913 = vmatpush1.msra.mxu0 0.0
  %914 = vmatprep.subr.mxu0 0.0
  %915 = vmatpush1.msra.mxu0 0.0
  %916 = vmatprep.subr.mxu0 0.0
  %917 = vmatpush1.msra.mxu0 0.0
  %918 = vmatprep.subr.mxu0 0.0
  %919 = vmatpush1.msra.mxu0 0.0
  %920 = vmatprep.subr.mxu0 0.0
  %921 = vmatpush1.msra.mxu0 0.0
  %922 = vmatprep.subr.mxu0 0.0
  %923 = vmatpush1.msra.mxu0 0.0
  %924 = vmatprep.subr.mxu0 0.0
  %925 = vmatpush1.msra.mxu0 0.0
  %926 = vmatprep.subr.mxu0 0.0
  %927 = vmatpush1.msra.mxu0 0.0
  %928 = vmatprep.subr.mxu0 0.0
  %929 = vmatpush1.msra.mxu0 0.0
  %930 = vmatprep.subr.mxu0 0.0
  %931 = vmatpush1.msra.mxu0 0.0
  %932 = vmatprep.subr.mxu0 0.0
  %933 = vmatpush1.msra.mxu0 0.0
  %934 = vmatprep.mubr.f32.mxu0 0.0
  %935 = vmatmul.mubr.f32.gmra.mrb[0].mxu0 %v868
  %v936 = vpop.f32.mrb[0].mxu0
  %v937 = vadd.f32 0.0, %v936
  %v938 = vpop.f32.mrb[0].mxu0
  %939 = vdwg.mxu0
  %v940 = vadd.f32 %v862, %v937
  %v941 = vxor.u32 %v940, 2147483648
  %v942 = vmul.f32 %v941, 1.442695
  %v943 = vpow.pop %v942
  %v944 = vadd.f32 %v943, 1.0
  %v945 = vrcp.pop %v944
  %v946 = vmul.f32 1.0, %v945
  %v947 = vtanh.pop %v940
  %v948 = vmul.f32 %v946, %v687
  %950 = vrot.lane.b32.xlu0 %v947, 64
  %v951 = vpop.permute.xlu0 %950
  %v953 = vmul.f32 %v946, %v951
  %955 = vrot.lane.b32.xlu0 %v953, 32
  %v956 = vpop.permute.xlu0 %955
  %v958 = vadd.f32 %v948, %v956
  %v959 = vtanh.pop %v958
  %961 = vrot.lane.b32.xlu0 %v959, 64
  %v962 = vpop.permute.xlu0 %961
  %v964 = vmul.f32 %v946, %v962
  %v965 = vld [vmem:[#allocation2 + $0x20] sm:$0xff]
  %967 = vrot.lane.b32.xlu0 %v794, 32
  %v968 = vpop.permute.xlu0 %967
  %v969 = vsel %vm223, %v968, 0
  %971 = vmatprep.subr.mxu0 0.0
  %972 = vmatpush1.msra.mxu0 %v187
  %973 = vmatprep.subr.mxu0 0.0
  %974 = vmatpush1.msra.mxu0 %v188
  %975 = vmatprep.subr.mxu0 0.0
  %976 = vmatpush1.msra.mxu0 %v189
  %977 = vmatprep.subr.mxu0 0.0
  %978 = vmatpush1.msra.mxu0 %v190
  %979 = vmatprep.subr.mxu0 0.0
  %980 = vmatpush1.msra.mxu0 0.0
  %981 = vmatprep.subr.mxu0 0.0
  %982 = vmatpush1.msra.mxu0 0.0
  %983 = vmatprep.subr.mxu0 0.0
  %984 = vmatpush1.msra.mxu0 0.0
  %985 = vmatprep.subr.mxu0 0.0
  %986 = vmatpush1.msra.mxu0 0.0
  %987 = vmatprep.subr.mxu0 0.0
  %988 = vmatpush1.msra.mxu0 0.0
  %989 = vmatprep.subr.mxu0 0.0
  %990 = vmatpush1.msra.mxu0 0.0
  %991 = vmatprep.subr.mxu0 0.0
  %992 = vmatpush1.msra.mxu0 0.0
  %993 = vmatprep.subr.mxu0 0.0
  %994 = vmatpush1.msra.mxu0 0.0
  %995 = vmatprep.subr.mxu0 0.0
  %996 = vmatpush1.msra.mxu0 0.0
  %997 = vmatprep.subr.mxu0 0.0
  %998 = vmatpush1.msra.mxu0 0.0
  %999 = vmatprep.subr.mxu0 0.0
  %1000 = vmatpush1.msra.mxu0 0.0
  %1001 = vmatprep.subr.mxu0 0.0
  %1002 = vmatpush1.msra.mxu0 0.0
  %1003 = vmatprep.subr.mxu0 0.0
  %1004 = vmatpush1.msra.mxu0 0.0
  %1005 = vmatprep.subr.mxu0 0.0
  %1006 = vmatpush1.msra.mxu0 0.0
  %1007 = vmatprep.subr.mxu0 0.0
  %1008 = vmatpush1.msra.mxu0 0.0
  %1009 = vmatprep.subr.mxu0 0.0
  %1010 = vmatpush1.msra.mxu0 0.0
  %1011 = vmatprep.subr.mxu0 0.0
  %1012 = vmatpush1.msra.mxu0 0.0
  %1013 = vmatprep.subr.mxu0 0.0
  %1014 = vmatpush1.msra.mxu0 0.0
  %1015 = vmatprep.subr.mxu0 0.0
  %1016 = vmatpush1.msra.mxu0 0.0
  %1017 = vmatprep.subr.mxu0 0.0
  %1018 = vmatpush1.msra.mxu0 0.0
  %1019 = vmatprep.subr.mxu0 0.0
  %1020 = vmatpush1.msra.mxu0 0.0
  %1021 = vmatprep.subr.mxu0 0.0
  %1022 = vmatpush1.msra.mxu0 0.0
  %1023 = vmatprep.subr.mxu0 0.0
  %1024 = vmatpush1.msra.mxu0 0.0
  %1025 = vmatprep.subr.mxu0 0.0
  %1026 = vmatpush1.msra.mxu0 0.0
  %1027 = vmatprep.subr.mxu0 0.0
  %1028 = vmatpush1.msra.mxu0 0.0
  %1029 = vmatprep.subr.mxu0 0.0
  %1030 = vmatpush1.msra.mxu0 0.0
  %1031 = vmatprep.subr.mxu0 0.0
  %1032 = vmatpush1.msra.mxu0 0.0
  %1033 = vmatprep.subr.mxu0 0.0
  %1034 = vmatpush1.msra.mxu0 0.0
  %1035 = vmatprep.mubr.f32.mxu0 0.0
  %1036 = vmatmul.mubr.f32.gmra.mrb[0].mxu0 %v969
  %v1037 = vpop.f32.mrb[0].mxu0
  %v1038 = vadd.f32 0.0, %v1037
  %v1039 = vpop.f32.mrb[0].mxu0
  %1040 = vdwg.mxu0
  %v1041 = vadd.f32 %v965, %v1038
  %v1042 = vxor.u32 %v1041, 2147483648
  %v1043 = vmul.f32 %v1042, 1.442695
  %v1044 = vpow.pop %v1043
  %v1045 = vadd.f32 %v1044, 1.0
  %v1046 = vrcp.pop %v1045
  %v1047 = vmul.f32 1.0, %v1046
  %v1048 = vtanh.pop %v1041
  %v1049 = vmul.f32 %v1047, %v788
  %1051 = vrot.lane.b32.xlu0 %v1048, 64
  %v1052 = vpop.permute.xlu0 %1051
  %v1054 = vmul.f32 %v1047, %v1052
  %1056 = vrot.lane.b32.xlu0 %v1054, 32
  %v1057 = vpop.permute.xlu0 %1056
  %v1059 = vadd.f32 %v1049, %v1057
  %v1060 = vtanh.pop %v1059
  %1062 = vrot.lane.b32.xlu0 %v1060, 64
  %v1063 = vpop.permute.xlu0 %1062
  %v1065 = vmul.f32 %v1047, %v1063
  %1066 = vmatprep.subr.mxu0 0.0
  %1067 = vmatpush1.msra.mxu0 %v195
  %1068 = vmatprep.subr.mxu0 0.0
  %1069 = vmatpush1.msra.mxu0 %v196
  %1070 = vmatprep.subr.mxu0 0.0
  %1071 = vmatpush1.msra.mxu0 %v197
  %1072 = vmatprep.subr.mxu0 0.0
  %1073 = vmatpush1.msra.mxu0 %v198
  %1074 = vmatprep.subr.mxu0 0.0
  %1075 = vmatpush1.msra.mxu0 0.0
  %1076 = vmatprep.subr.mxu0 0.0
  %1077 = vmatpush1.msra.mxu0 0.0
  %1078 = vmatprep.subr.mxu0 0.0
  %1079 = vmatpush1.msra.mxu0 0.0
  %1080 = vmatprep.subr.mxu0 0.0
  %1081 = vmatpush1.msra.mxu0 0.0
  %1082 = vmatprep.subr.mxu0 0.0
  %1083 = vmatpush1.msra.mxu0 0.0
  %1084 = vmatprep.subr.mxu0 0.0
  %1085 = vmatpush1.msra.mxu0 0.0
  %1086 = vmatprep.subr.mxu0 0.0
  %1087 = vmatpush1.msra.mxu0 0.0
  %1088 = vmatprep.subr.mxu0 0.0
  %1089 = vmatpush1.msra.mxu0 0.0
  %1090 = vmatprep.subr.mxu0 0.0
  %1091 = vmatpush1.msra.mxu0 0.0
  %1092 = vmatprep.subr.mxu0 0.0
  %1093 = vmatpush1.msra.mxu0 0.0
  %1094 = vmatprep.subr.mxu0 0.0
  %1095 = vmatpush1.msra.mxu0 0.0
  %1096 = vmatprep.subr.mxu0 0.0
  %1097 = vmatpush1.msra.mxu0 0.0
  %1098 = vmatprep.subr.mxu0 0.0
  %1099 = vmatpush1.msra.mxu0 0.0
  %1100 = vmatprep.subr.mxu0 0.0
  %1101 = vmatpush1.msra.mxu0 0.0
  %1102 = vmatprep.subr.mxu0 0.0
  %1103 = vmatpush1.msra.mxu0 0.0
  %1104 = vmatprep.subr.mxu0 0.0
  %1105 = vmatpush1.msra.mxu0 0.0
  %1106 = vmatprep.subr.mxu0 0.0
  %1107 = vmatpush1.msra.mxu0 0.0
  %1108 = vmatprep.subr.mxu0 0.0
  %1109 = vmatpush1.msra.mxu0 0.0
  %1110 = vmatprep.subr.mxu0 0.0
  %1111 = vmatpush1.msra.mxu0 0.0
  %1112 = vmatprep.subr.mxu0 0.0
  %1113 = vmatpush1.msra.mxu0 0.0
  %1114 = vmatprep.subr.mxu0 0.0
  %1115 = vmatpush1.msra.mxu0 0.0
  %1116 = vmatprep.subr.mxu0 0.0
  %1117 = vmatpush1.msra.mxu0 0.0
  %1118 = vmatprep.subr.mxu0 0.0
  %1119 = vmatpush1.msra.mxu0 0.0
  %1120 = vmatprep.subr.mxu0 0.0
  %1121 = vmatpush1.msra.mxu0 0.0
  %1122 = vmatprep.subr.mxu0 0.0
  %1123 = vmatpush1.msra.mxu0 0.0
  %1124 = vmatprep.subr.mxu0 0.0
  %1125 = vmatpush1.msra.mxu0 0.0
  %1126 = vmatprep.subr.mxu0 0.0
  %1127 = vmatpush1.msra.mxu0 0.0
  %1128 = vmatprep.subr.mxu0 0.0
  %1129 = vmatpush1.msra.mxu0 0.0
  %1130 = vmatprep.mubr.f32.mxu0 0.0
  %1131 = vmatmul.mubr.f32.gmra.mrb[0].mxu0 %v969
  %v1132 = vpop.f32.mrb[0].mxu0
  %v1133 = vadd.f32 %v329, %v1132
  %v1134 = vpop.f32.mrb[0].mxu0
  %1135 = vdwg.mxu0
  %1137 = vrot.lane.b32.xlu0 %v964, 32
  %v1138 = vpop.permute.xlu0 %1137
  %v1139 = vsel %vm223, %v1138, 0
  %1141 = vmatprep.subr.mxu0 0.0
  %1142 = vmatpush1.msra.mxu0 %v191
  %1143 = vmatprep.subr.mxu0 0.0
  %1144 = vmatpush1.msra.mxu0 %v192
  %1145 = vmatprep.subr.mxu0 0.0
  %1146 = vmatpush1.msra.mxu0 %v193
  %1147 = vmatprep.subr.mxu0 0.0
  %1148 = vmatpush1.msra.mxu0 %v194
  %1149 = vmatprep.subr.mxu0 0.0
  %1150 = vmatpush1.msra.mxu0 0.0
  %1151 = vmatprep.subr.mxu0 0.0
  %1152 = vmatpush1.msra.mxu0 0.0
  %1153 = vmatprep.subr.mxu0 0.0
  %1154 = vmatpush1.msra.mxu0 0.0
  %1155 = vmatprep.subr.mxu0 0.0
  %1156 = vmatpush1.msra.mxu0 0.0
  %1157 = vmatprep.subr.mxu0 0.0
  %1158 = vmatpush1.msra.mxu0 0.0
  %1159 = vmatprep.subr.mxu0 0.0
  %1160 = vmatpush1.msra.mxu0 0.0
  %1161 = vmatprep.subr.mxu0 0.0
  %1162 = vmatpush1.msra.mxu0 0.0
  %1163 = vmatprep.subr.mxu0 0.0
  %1164 = vmatpush1.msra.mxu0 0.0
  %1165 = vmatprep.subr.mxu0 0.0
  %1166 = vmatpush1.msra.mxu0 0.0
  %1167 = vmatprep.subr.mxu0 0.0
  %1168 = vmatpush1.msra.mxu0 0.0
  %1169 = vmatprep.subr.mxu0 0.0
  %1170 = vmatpush1.msra.mxu0 0.0
  %1171 = vmatprep.subr.mxu0 0.0
  %1172 = vmatpush1.msra.mxu0 0.0
  %1173 = vmatprep.subr.mxu0 0.0
  %1174 = vmatpush1.msra.mxu0 0.0
  %1175 = vmatprep.subr.mxu0 0.0
  %1176 = vmatpush1.msra.mxu0 0.0
  %1177 = vmatprep.subr.mxu0 0.0
  %1178 = vmatpush1.msra.mxu0 0.0
  %1179 = vmatprep.subr.mxu0 0.0
  %1180 = vmatpush1.msra.mxu0 0.0
  %1181 = vmatprep.subr.mxu0 0.0
  %1182 = vmatpush1.msra.mxu0 0.0
  %1183 = vmatprep.subr.mxu0 0.0
  %1184 = vmatpush1.msra.mxu0 0.0
  %1185 = vmatprep.subr.mxu0 0.0
  %1186 = vmatpush1.msra.mxu0 0.0
  %1187 = vmatprep.subr.mxu0 0.0
  %1188 = vmatpush1.msra.mxu0 0.0
  %1189 = vmatprep.subr.mxu0 0.0
  %1190 = vmatpush1.msra.mxu0 0.0
  %1191 = vmatprep.subr.mxu0 0.0
  %1192 = vmatpush1.msra.mxu0 0.0
  %1193 = vmatprep.subr.mxu0 0.0
  %1194 = vmatpush1.msra.mxu0 0.0
  %1195 = vmatprep.subr.mxu0 0.0
  %1196 = vmatpush1.msra.mxu0 0.0
  %1197 = vmatprep.subr.mxu0 0.0
  %1198 = vmatpush1.msra.mxu0 0.0
  %1199 = vmatprep.subr.mxu0 0.0
  %1200 = vmatpush1.msra.mxu0 0.0
  %1201 = vmatprep.subr.mxu0 0.0
  %1202 = vmatpush1.msra.mxu0 0.0
  %1203 = vmatprep.subr.mxu0 0.0
  %1204 = vmatpush1.msra.mxu0 0.0
  %1205 = vmatprep.mubr.f32.mxu0 0.0
  %1206 = vmatmul.mubr.f32.gmra.mrb[0].mxu0 %v1139
  %v1207 = vpop.f32.mrb[0].mxu0
  %v1208 = vadd.f32 0.0, %v1207
  %v1209 = vpop.f32.mrb[0].mxu0
  %1210 = vdwg.mxu0
  %v1211 = vadd.f32 %v1133, %v1208
  %v1212 = vxor.u32 %v1211, 2147483648
  %v1213 = vmul.f32 %v1212, 1.442695
  %v1214 = vpow.pop %v1213
  %v1215 = vadd.f32 %v1214, 1.0
  %v1216 = vrcp.pop %v1215
  %v1217 = vmul.f32 1.0, %v1216
  %v1218 = vtanh.pop %v1211
  %v1219 = vmul.f32 %v1217, %v958
  %1221 = vrot.lane.b32.xlu0 %v1218, 64
  %v1222 = vpop.permute.xlu0 %1221
  %v1224 = vmul.f32 %v1217, %v1222
  %1226 = vrot.lane.b32.xlu0 %v1224, 32
  %v1227 = vpop.permute.xlu0 %1226
  %v1229 = vadd.f32 %v1219, %v1227
  %v1230 = vtanh.pop %v1229
  %1232 = vrot.lane.b32.xlu0 %v1230, 64
  %v1233 = vpop.permute.xlu0 %1232
  %v1235 = vmul.f32 %v1217, %v1233
  %v1236 = vld [vmem:[#allocation2 + $0x28] sm:$0xff]
  %1238 = vrot.lane.b32.xlu0 %v1065, 32
  %v1239 = vpop.permute.xlu0 %1238
  %v1240 = vsel %vm223, %v1239, 0
  %1242 = vmatprep.subr.mxu0 0.0
  %1243 = vmatpush1.msra.mxu0 %v187
  %1244 = vmatprep.subr.mxu0 0.0
  %1245 = vmatpush1.msra.mxu0 %v188
  %1246 = vmatprep.subr.mxu0 0.0
  %1247 = vmatpush1.msra.mxu0 %v189
  %1248 = vmatprep.subr.mxu0 0.0
  %1249 = vmatpush1.msra.mxu0 %v190
  %1250 = vmatprep.subr.mxu0 0.0
  %1251 = vmatpush1.msra.mxu0 0.0
  %1252 = vmatprep.subr.mxu0 0.0
  %1253 = vmatpush1.msra.mxu0 0.0
  %1254 = vmatprep.subr.mxu0 0.0
  %1255 = vmatpush1.msra.mxu0 0.0
  %1256 = vmatprep.subr.mxu0 0.0
  %1257 = vmatpush1.msra.mxu0 0.0
  %1258 = vmatprep.subr.mxu0 0.0
  %1259 = vmatpush1.msra.mxu0 0.0
  %1260 = vmatprep.subr.mxu0 0.0
  %1261 = vmatpush1.msra.mxu0 0.0
  %1262 = vmatprep.subr.mxu0 0.0
  %1263 = vmatpush1.msra.mxu0 0.0
  %1264 = vmatprep.subr.mxu0 0.0
  %1265 = vmatpush1.msra.mxu0 0.0
  %1266 = vmatprep.subr.mxu0 0.0
  %1267 = vmatpush1.msra.mxu0 0.0
  %1268 = vmatprep.subr.mxu0 0.0
  %1269 = vmatpush1.msra.mxu0 0.0
  %1270 = vmatprep.subr.mxu0 0.0
  %1271 = vmatpush1.msra.mxu0 0.0
  %1272 = vmatprep.subr.mxu0 0.0
  %1273 = vmatpush1.msra.mxu0 0.0
  %1274 = vmatprep.subr.mxu0 0.0
  %1275 = vmatpush1.msra.mxu0 0.0
  %1276 = vmatprep.subr.mxu0 0.0
  %1277 = vmatpush1.msra.mxu0 0.0
  %1278 = vmatprep.subr.mxu0 0.0
  %1279 = vmatpush1.msra.mxu0 0.0
  %1280 = vmatprep.subr.mxu0 0.0
  %1281 = vmatpush1.msra.mxu0 0.0
  %1282 = vmatprep.subr.mxu0 0.0
  %1283 = vmatpush1.msra.mxu0 0.0
  %1284 = vmatprep.subr.mxu0 0.0
  %1285 = vmatpush1.msra.mxu0 0.0
  %1286 = vmatprep.subr.mxu0 0.0
  %1287 = vmatpush1.msra.mxu0 0.0
  %1288 = vmatprep.subr.mxu0 0.0
  %1289 = vmatpush1.msra.mxu0 0.0
  %1290 = vmatprep.subr.mxu0 0.0
  %1291 = vmatpush1.msra.mxu0 0.0
  %1292 = vmatprep.subr.mxu0 0.0
  %1293 = vmatpush1.msra.mxu0 0.0
  %1294 = vmatprep.subr.mxu0 0.0
  %1295 = vmatpush1.msra.mxu0 0.0
  %1296 = vmatprep.subr.mxu0 0.0
  %1297 = vmatpush1.msra.mxu0 0.0
  %1298 = vmatprep.subr.mxu0 0.0
  %1299 = vmatpush1.msra.mxu0 0.0
  %1300 = vmatprep.subr.mxu0 0.0
  %1301 = vmatpush1.msra.mxu0 0.0
  %1302 = vmatprep.subr.mxu0 0.0
  %1303 = vmatpush1.msra.mxu0 0.0
  %1304 = vmatprep.subr.mxu0 0.0
  %1305 = vmatpush1.msra.mxu0 0.0
  %1306 = vmatprep.mubr.f32.mxu0 0.0
  %1307 = vmatmul.mubr.f32.gmra.mrb[0].mxu0 %v1240
  %v1308 = vpop.f32.mrb[0].mxu0
  %v1309 = vadd.f32 0.0, %v1308
  %v1310 = vpop.f32.mrb[0].mxu0
  %1311 = vdwg.mxu0
  %v1312 = vadd.f32 %v1236, %v1309
  %v1313 = vxor.u32 %v1312, 2147483648
  %v1314 = vmul.f32 %v1313, 1.442695
  %v1315 = vpow.pop %v1314
  %v1316 = vadd.f32 %v1315, 1.0
  %v1317 = vrcp.pop %v1316
  %v1318 = vmul.f32 1.0, %v1317
  %v1319 = vtanh.pop %v1312
  %v1320 = vmul.f32 %v1318, %v1059
  %1322 = vrot.lane.b32.xlu0 %v1319, 64
  %v1323 = vpop.permute.xlu0 %1322
  %v1325 = vmul.f32 %v1318, %v1323
  %1327 = vrot.lane.b32.xlu0 %v1325, 32
  %v1328 = vpop.permute.xlu0 %1327
  %v1330 = vadd.f32 %v1320, %v1328
  %v1331 = vtanh.pop %v1330
  %1333 = vrot.lane.b32.xlu0 %v1331, 64
  %v1334 = vpop.permute.xlu0 %1333
  %v1336 = vmul.f32 %v1318, %v1334
  %1337 = vmatprep.subr.mxu0 0.0
  %1338 = vmatpush1.msra.mxu0 %v195
  %1339 = vmatprep.subr.mxu0 0.0
  %1340 = vmatpush1.msra.mxu0 %v196
  %1341 = vmatprep.subr.mxu0 0.0
  %1342 = vmatpush1.msra.mxu0 %v197
  %1343 = vmatprep.subr.mxu0 0.0
  %1344 = vmatpush1.msra.mxu0 %v198
  %1345 = vmatprep.subr.mxu0 0.0
  %1346 = vmatpush1.msra.mxu0 0.0
  %1347 = vmatprep.subr.mxu0 0.0
  %1348 = vmatpush1.msra.mxu0 0.0
  %1349 = vmatprep.subr.mxu0 0.0
  %1350 = vmatpush1.msra.mxu0 0.0
  %1351 = vmatprep.subr.mxu0 0.0
  %1352 = vmatpush1.msra.mxu0 0.0
  %1353 = vmatprep.subr.mxu0 0.0
  %1354 = vmatpush1.msra.mxu0 0.0
  %1355 = vmatprep.subr.mxu0 0.0
  %1356 = vmatpush1.msra.mxu0 0.0
  %1357 = vmatprep.subr.mxu0 0.0
  %1358 = vmatpush1.msra.mxu0 0.0
  %1359 = vmatprep.subr.mxu0 0.0
  %1360 = vmatpush1.msra.mxu0 0.0
  %1361 = vmatprep.subr.mxu0 0.0
  %1362 = vmatpush1.msra.mxu0 0.0
  %1363 = vmatprep.subr.mxu0 0.0
  %1364 = vmatpush1.msra.mxu0 0.0
  %1365 = vmatprep.subr.mxu0 0.0
  %1366 = vmatpush1.msra.mxu0 0.0
  %1367 = vmatprep.subr.mxu0 0.0
  %1368 = vmatpush1.msra.mxu0 0.0
  %1369 = vmatprep.subr.mxu0 0.0
  %1370 = vmatpush1.msra.mxu0 0.0
  %1371 = vmatprep.subr.mxu0 0.0
  %1372 = vmatpush1.msra.mxu0 0.0
  %1373 = vmatprep.subr.mxu0 0.0
  %1374 = vmatpush1.msra.mxu0 0.0
  %1375 = vmatprep.subr.mxu0 0.0
  %1376 = vmatpush1.msra.mxu0 0.0
  %1377 = vmatprep.subr.mxu0 0.0
  %1378 = vmatpush1.msra.mxu0 0.0
  %1379 = vmatprep.subr.mxu0 0.0
  %1380 = vmatpush1.msra.mxu0 0.0
  %1381 = vmatprep.subr.mxu0 0.0
  %1382 = vmatpush1.msra.mxu0 0.0
  %1383 = vmatprep.subr.mxu0 0.0
  %1384 = vmatpush1.msra.mxu0 0.0
  %1385 = vmatprep.subr.mxu0 0.0
  %1386 = vmatpush1.msra.mxu0 0.0
  %1387 = vmatprep.subr.mxu0 0.0
  %1388 = vmatpush1.msra.mxu0 0.0
  %1389 = vmatprep.subr.mxu0 0.0
  %1390 = vmatpush1.msra.mxu0 0.0
  %1391 = vmatprep.subr.mxu0 0.0
  %1392 = vmatpush1.msra.mxu0 0.0
  %1393 = vmatprep.subr.mxu0 0.0
  %1394 = vmatpush1.msra.mxu0 0.0
  %1395 = vmatprep.subr.mxu0 0.0
  %1396 = vmatpush1.msra.mxu0 0.0
  %1397 = vmatprep.subr.mxu0 0.0
  %1398 = vmatpush1.msra.mxu0 0.0
  %1399 = vmatprep.subr.mxu0 0.0
  %1400 = vmatpush1.msra.mxu0 0.0
  %1401 = vmatprep.mubr.f32.mxu0 0.0
  %1402 = vmatmul.mubr.f32.gmra.mrb[0].mxu0 %v1240
  %v1403 = vpop.f32.mrb[0].mxu0
  %v1404 = vadd.f32 %v329, %v1403
  %v1405 = vpop.f32.mrb[0].mxu0
  %1406 = vdwg.mxu0
  %1408 = vrot.lane.b32.xlu0 %v1235, 32
  %v1409 = vpop.permute.xlu0 %1408
  %v1410 = vsel %vm223, %v1409, 0
  %1412 = vmatprep.subr.mxu0 0.0
  %1413 = vmatpush1.msra.mxu0 %v191
  %1414 = vmatprep.subr.mxu0 0.0
  %1415 = vmatpush1.msra.mxu0 %v192
  %1416 = vmatprep.subr.mxu0 0.0
  %1417 = vmatpush1.msra.mxu0 %v193
  %1418 = vmatprep.subr.mxu0 0.0
  %1419 = vmatpush1.msra.mxu0 %v194
  %1420 = vmatprep.subr.mxu0 0.0
  %1421 = vmatpush1.msra.mxu0 0.0
  %1422 = vmatprep.subr.mxu0 0.0
  %1423 = vmatpush1.msra.mxu0 0.0
  %1424 = vmatprep.subr.mxu0 0.0
  %1425 = vmatpush1.msra.mxu0 0.0
  %1426 = vmatprep.subr.mxu0 0.0
  %1427 = vmatpush1.msra.mxu0 0.0
  %1428 = vmatprep.subr.mxu0 0.0
  %1429 = vmatpush1.msra.mxu0 0.0
  %1430 = vmatprep.subr.mxu0 0.0
  %1431 = vmatpush1.msra.mxu0 0.0
  %1432 = vmatprep.subr.mxu0 0.0
  %1433 = vmatpush1.msra.mxu0 0.0
  %1434 = vmatprep.subr.mxu0 0.0
  %1435 = vmatpush1.msra.mxu0 0.0
  %1436 = vmatprep.subr.mxu0 0.0
  %1437 = vmatpush1.msra.mxu0 0.0
  %1438 = vmatprep.subr.mxu0 0.0
  %1439 = vmatpush1.msra.mxu0 0.0
  %1440 = vmatprep.subr.mxu0 0.0
  %1441 = vmatpush1.msra.mxu0 0.0
  %1442 = vmatprep.subr.mxu0 0.0
  %1443 = vmatpush1.msra.mxu0 0.0
  %1444 = vmatprep.subr.mxu0 0.0
  %1445 = vmatpush1.msra.mxu0 0.0
  %1446 = vmatprep.subr.mxu0 0.0
  %1447 = vmatpush1.msra.mxu0 0.0
  %1448 = vmatprep.subr.mxu0 0.0
  %1449 = vmatpush1.msra.mxu0 0.0
  %1450 = vmatprep.subr.mxu0 0.0
  %1451 = vmatpush1.msra.mxu0 0.0
  %1452 = vmatprep.subr.mxu0 0.0
  %1453 = vmatpush1.msra.mxu0 0.0
  %1454 = vmatprep.subr.mxu0 0.0
  %1455 = vmatpush1.msra.mxu0 0.0
  %1456 = vmatprep.subr.mxu0 0.0
  %1457 = vmatpush1.msra.mxu0 0.0
  %1458 = vmatprep.subr.mxu0 0.0
  %1459 = vmatpush1.msra.mxu0 0.0
  %1460 = vmatprep.subr.mxu0 0.0
  %1461 = vmatpush1.msra.mxu0 0.0
  %1462 = vmatprep.subr.mxu0 0.0
  %1463 = vmatpush1.msra.mxu0 0.0
  %1464 = vmatprep.subr.mxu0 0.0
  %1465 = vmatpush1.msra.mxu0 0.0
  %1466 = vmatprep.subr.mxu0 0.0
  %1467 = vmatpush1.msra.mxu0 0.0
  %1468 = vmatprep.subr.mxu0 0.0
  %1469 = vmatpush1.msra.mxu0 0.0
  %1470 = vmatprep.subr.mxu0 0.0
  %1471 = vmatpush1.msra.mxu0 0.0
  %1472 = vmatprep.subr.mxu0 0.0
  %1473 = vmatpush1.msra.mxu0 0.0
  %1474 = vmatprep.subr.mxu0 0.0
  %1475 = vmatpush1.msra.mxu0 0.0
  %1476 = vmatprep.mubr.f32.mxu0 0.0
  %1477 = vmatmul.mubr.f32.gmra.mrb[0].mxu0 %v1410
  %v1478 = vpop.f32.mrb[0].mxu0
  %v1479 = vadd.f32 0.0, %v1478
  %v1480 = vpop.f32.mrb[0].mxu0
  %1481 = vdwg.mxu0
  %v1482 = vadd.f32 %v1404, %v1479
  %v1483 = vxor.u32 %v1482, 2147483648
  %v1484 = vmul.f32 %v1483, 1.442695
  %v1485 = vpow.pop %v1484
  %v1486 = vadd.f32 %v1485, 1.0
  %v1487 = vrcp.pop %v1486
  %v1488 = vmul.f32 1.0, %v1487
  %v1489 = vtanh.pop %v1482
  %v1490 = vmul.f32 %v1488, %v1229
  %1492 = vrot.lane.b32.xlu0 %v1489, 64
  %v1493 = vpop.permute.xlu0 %1492
  %v1495 = vmul.f32 %v1488, %v1493
  %1497 = vrot.lane.b32.xlu0 %v1495, 32
  %v1498 = vpop.permute.xlu0 %1497
  %v1500 = vadd.f32 %v1490, %v1498
  %v1501 = vtanh.pop %v1500
  %1503 = vrot.lane.b32.xlu0 %v1501, 64
  %v1504 = vpop.permute.xlu0 %1503
  %v1506 = vmul.f32 %v1488, %v1504
  %v1507 = vld [vmem:[#allocation2 + $0x30] sm:$0xff]
  %1509 = vrot.lane.b32.xlu0 %v1336, 32
  %v1510 = vpop.permute.xlu0 %1509
  %v1511 = vsel %vm223, %v1510, 0
  %1513 = vmatprep.subr.mxu0 0.0
  %1514 = vmatpush1.msra.mxu0 %v187
  %1515 = vmatprep.subr.mxu0 0.0
  %1516 = vmatpush1.msra.mxu0 %v188
  %1517 = vmatprep.subr.mxu0 0.0
  %1518 = vmatpush1.msra.mxu0 %v189
  %1519 = vmatprep.subr.mxu0 0.0
  %1520 = vmatpush1.msra.mxu0 %v190
  %1521 = vmatprep.subr.mxu0 0.0
  %1522 = vmatpush1.msra.mxu0 0.0
  %1523 = vmatprep.subr.mxu0 0.0
  %1524 = vmatpush1.msra.mxu0 0.0
  %1525 = vmatprep.subr.mxu0 0.0
  %1526 = vmatpush1.msra.mxu0 0.0
  %1527 = vmatprep.subr.mxu0 0.0
  %1528 = vmatpush1.msra.mxu0 0.0
  %1529 = vmatprep.subr.mxu0 0.0
  %1530 = vmatpush1.msra.mxu0 0.0
  %1531 = vmatprep.subr.mxu0 0.0
  %1532 = vmatpush1.msra.mxu0 0.0
  %1533 = vmatprep.subr.mxu0 0.0
  %1534 = vmatpush1.msra.mxu0 0.0
  %1535 = vmatprep.subr.mxu0 0.0
  %1536 = vmatpush1.msra.mxu0 0.0
  %1537 = vmatprep.subr.mxu0 0.0
  %1538 = vmatpush1.msra.mxu0 0.0
  %1539 = vmatprep.subr.mxu0 0.0
  %1540 = vmatpush1.msra.mxu0 0.0
  %1541 = vmatprep.subr.mxu0 0.0
  %1542 = vmatpush1.msra.mxu0 0.0
  %1543 = vmatprep.subr.mxu0 0.0
  %1544 = vmatpush1.msra.mxu0 0.0
  %1545 = vmatprep.subr.mxu0 0.0
  %1546 = vmatpush1.msra.mxu0 0.0
  %1547 = vmatprep.subr.mxu0 0.0
  %1548 = vmatpush1.msra.mxu0 0.0
  %1549 = vmatprep.subr.mxu0 0.0
  %1550 = vmatpush1.msra.mxu0 0.0
  %1551 = vmatprep.subr.mxu0 0.0
  %1552 = vmatpush1.msra.mxu0 0.0
  %1553 = vmatprep.subr.mxu0 0.0
  %1554 = vmatpush1.msra.mxu0 0.0
  %1555 = vmatprep.subr.mxu0 0.0
  %1556 = vmatpush1.msra.mxu0 0.0
  %1557 = vmatprep.subr.mxu0 0.0
  %1558 = vmatpush1.msra.mxu0 0.0
  %1559 = vmatprep.subr.mxu0 0.0
  %1560 = vmatpush1.msra.mxu0 0.0
  %1561 = vmatprep.subr.mxu0 0.0
  %1562 = vmatpush1.msra.mxu0 0.0
  %1563 = vmatprep.subr.mxu0 0.0
  %1564 = vmatpush1.msra.mxu0 0.0
  %1565 = vmatprep.subr.mxu0 0.0
  %1566 = vmatpush1.msra.mxu0 0.0
  %1567 = vmatprep.subr.mxu0 0.0
  %1568 = vmatpush1.msra.mxu0 0.0
  %1569 = vmatprep.subr.mxu0 0.0
  %1570 = vmatpush1.msra.mxu0 0.0
  %1571 = vmatprep.subr.mxu0 0.0
  %1572 = vmatpush1.msra.mxu0 0.0
  %1573 = vmatprep.subr.mxu0 0.0
  %1574 = vmatpush1.msra.mxu0 0.0
  %1575 = vmatprep.subr.mxu0 0.0
  %1576 = vmatpush1.msra.mxu0 0.0
  %1577 = vmatprep.mubr.f32.mxu0 0.0
  %1578 = vmatmul.mubr.f32.gmra.mrb[0].mxu0 %v1511
  %v1579 = vpop.f32.mrb[0].mxu0
  %v1580 = vadd.f32 0.0, %v1579
  %v1581 = vpop.f32.mrb[0].mxu0
  %1582 = vdwg.mxu0
  %v1583 = vadd.f32 %v1507, %v1580
  %v1584 = vxor.u32 %v1583, 2147483648
  %v1585 = vmul.f32 %v1584, 1.442695
  %v1586 = vpow.pop %v1585
  %v1587 = vadd.f32 %v1586, 1.0
  %v1588 = vrcp.pop %v1587
  %v1589 = vmul.f32 1.0, %v1588
  %v1590 = vtanh.pop %v1583
  %v1591 = vmul.f32 %v1589, %v1330
  %1593 = vrot.lane.b32.xlu0 %v1590, 64
  %v1594 = vpop.permute.xlu0 %1593
  %v1596 = vmul.f32 %v1589, %v1594
  %1598 = vrot.lane.b32.xlu0 %v1596, 32
  %v1599 = vpop.permute.xlu0 %1598
  %v1601 = vadd.f32 %v1591, %v1599
  %v1602 = vtanh.pop %v1601
  %1604 = vrot.lane.b32.xlu0 %v1602, 64
  %v1605 = vpop.permute.xlu0 %1604
  %v1607 = vmul.f32 %v1589, %v1605
  %1608 = vmatprep.subr.mxu0 0.0
  %1609 = vmatpush1.msra.mxu0 %v195
  %1610 = vmatprep.subr.mxu0 0.0
  %1611 = vmatpush1.msra.mxu0 %v196
  %1612 = vmatprep.subr.mxu0 0.0
  %1613 = vmatpush1.msra.mxu0 %v197
  %1614 = vmatprep.subr.mxu0 0.0
  %1615 = vmatpush1.msra.mxu0 %v198
  %1616 = vmatprep.subr.mxu0 0.0
  %1617 = vmatpush1.msra.mxu0 0.0
  %1618 = vmatprep.subr.mxu0 0.0
  %1619 = vmatpush1.msra.mxu0 0.0
  %1620 = vmatprep.subr.mxu0 0.0
  %1621 = vmatpush1.msra.mxu0 0.0
  %1622 = vmatprep.subr.mxu0 0.0
  %1623 = vmatpush1.msra.mxu0 0.0
  %1624 = vmatprep.subr.mxu0 0.0
  %1625 = vmatpush1.msra.mxu0 0.0
  %1626 = vmatprep.subr.mxu0 0.0
  %1627 = vmatpush1.msra.mxu0 0.0
  %1628 = vmatprep.subr.mxu0 0.0
  %1629 = vmatpush1.msra.mxu0 0.0
  %1630 = vmatprep.subr.mxu0 0.0
  %1631 = vmatpush1.msra.mxu0 0.0
  %1632 = vmatprep.subr.mxu0 0.0
  %1633 = vmatpush1.msra.mxu0 0.0
  %1634 = vmatprep.subr.mxu0 0.0
  %1635 = vmatpush1.msra.mxu0 0.0
  %1636 = vmatprep.subr.mxu0 0.0
  %1637 = vmatpush1.msra.mxu0 0.0
  %1638 = vmatprep.subr.mxu0 0.0
  %1639 = vmatpush1.msra.mxu0 0.0
  %1640 = vmatprep.subr.mxu0 0.0
  %1641 = vmatpush1.msra.mxu0 0.0
  %1642 = vmatprep.subr.mxu0 0.0
  %1643 = vmatpush1.msra.mxu0 0.0
  %1644 = vmatprep.subr.mxu0 0.0
  %1645 = vmatpush1.msra.mxu0 0.0
  %1646 = vmatprep.subr.mxu0 0.0
  %1647 = vmatpush1.msra.mxu0 0.0
  %1648 = vmatprep.subr.mxu0 0.0
  %1649 = vmatpush1.msra.mxu0 0.0
  %1650 = vmatprep.subr.mxu0 0.0
  %1651 = vmatpush1.msra.mxu0 0.0
  %1652 = vmatprep.subr.mxu0 0.0
  %1653 = vmatpush1.msra.mxu0 0.0
  %1654 = vmatprep.subr.mxu0 0.0
  %1655 = vmatpush1.msra.mxu0 0.0
  %1656 = vmatprep.subr.mxu0 0.0
  %1657 = vmatpush1.msra.mxu0 0.0
  %1658 = vmatprep.subr.mxu0 0.0
  %1659 = vmatpush1.msra.mxu0 0.0
  %1660 = vmatprep.subr.mxu0 0.0
  %1661 = vmatpush1.msra.mxu0 0.0
  %1662 = vmatprep.subr.mxu0 0.0
  %1663 = vmatpush1.msra.mxu0 0.0
  %1664 = vmatprep.subr.mxu0 0.0
  %1665 = vmatpush1.msra.mxu0 0.0
  %1666 = vmatprep.subr.mxu0 0.0
  %1667 = vmatpush1.msra.mxu0 0.0
  %1668 = vmatprep.subr.mxu0 0.0
  %1669 = vmatpush1.msra.mxu0 0.0
  %1670 = vmatprep.subr.mxu0 0.0
  %1671 = vmatpush1.msra.mxu0 0.0
  %1672 = vmatprep.mubr.f32.mxu0 0.0
  %1673 = vmatmul.mubr.f32.gmra.mrb[0].mxu0 %v1511
  %v1674 = vpop.f32.mrb[0].mxu0
  %v1675 = vadd.f32 %v329, %v1674
  %v1676 = vpop.f32.mrb[0].mxu0
  %1677 = vdwg.mxu0
  %1679 = vrot.lane.b32.xlu0 %v1506, 32
  %v1680 = vpop.permute.xlu0 %1679
  %v1681 = vsel %vm223, %v1680, 0
  %1683 = vmatprep.subr.mxu0 0.0
  %1684 = vmatpush1.msra.mxu0 %v191
  %1685 = vmatprep.subr.mxu0 0.0
  %1686 = vmatpush1.msra.mxu0 %v192
  %1687 = vmatprep.subr.mxu0 0.0
  %1688 = vmatpush1.msra.mxu0 %v193
  %1689 = vmatprep.subr.mxu0 0.0
  %1690 = vmatpush1.msra.mxu0 %v194
  %1691 = vmatprep.subr.mxu0 0.0
  %1692 = vmatpush1.msra.mxu0 0.0
  %1693 = vmatprep.subr.mxu0 0.0
  %1694 = vmatpush1.msra.mxu0 0.0
  %1695 = vmatprep.subr.mxu0 0.0
  %1696 = vmatpush1.msra.mxu0 0.0
  %1697 = vmatprep.subr.mxu0 0.0
  %1698 = vmatpush1.msra.mxu0 0.0
  %1699 = vmatprep.subr.mxu0 0.0
  %1700 = vmatpush1.msra.mxu0 0.0
  %1701 = vmatprep.subr.mxu0 0.0
  %1702 = vmatpush1.msra.mxu0 0.0
  %1703 = vmatprep.subr.mxu0 0.0
  %1704 = vmatpush1.msra.mxu0 0.0
  %1705 = vmatprep.subr.mxu0 0.0
  %1706 = vmatpush1.msra.mxu0 0.0
  %1707 = vmatprep.subr.mxu0 0.0
  %1708 = vmatpush1.msra.mxu0 0.0
  %1709 = vmatprep.subr.mxu0 0.0
  %1710 = vmatpush1.msra.mxu0 0.0
  %1711 = vmatprep.subr.mxu0 0.0
  %1712 = vmatpush1.msra.mxu0 0.0
  %1713 = vmatprep.subr.mxu0 0.0
  %1714 = vmatpush1.msra.mxu0 0.0
  %1715 = vmatprep.subr.mxu0 0.0
  %1716 = vmatpush1.msra.mxu0 0.0
  %1717 = vmatprep.subr.mxu0 0.0
  %1718 = vmatpush1.msra.mxu0 0.0
  %1719 = vmatprep.subr.mxu0 0.0
  %1720 = vmatpush1.msra.mxu0 0.0
  %1721 = vmatprep.subr.mxu0 0.0
  %1722 = vmatpush1.msra.mxu0 0.0
  %1723 = vmatprep.subr.mxu0 0.0
  %1724 = vmatpush1.msra.mxu0 0.0
  %1725 = vmatprep.subr.mxu0 0.0
  %1726 = vmatpush1.msra.mxu0 0.0
  %1727 = vmatprep.subr.mxu0 0.0
  %1728 = vmatpush1.msra.mxu0 0.0
  %1729 = vmatprep.subr.mxu0 0.0
  %1730 = vmatpush1.msra.mxu0 0.0
  %1731 = vmatprep.subr.mxu0 0.0
  %1732 = vmatpush1.msra.mxu0 0.0
  %1733 = vmatprep.subr.mxu0 0.0
  %1734 = vmatpush1.msra.mxu0 0.0
  %1735 = vmatprep.subr.mxu0 0.0
  %1736 = vmatpush1.msra.mxu0 0.0
  %1737 = vmatprep.subr.mxu0 0.0
  %1738 = vmatpush1.msra.mxu0 0.0
  %1739 = vmatprep.subr.mxu0 0.0
  %1740 = vmatpush1.msra.mxu0 0.0
  %1741 = vmatprep.subr.mxu0 0.0
  %1742 = vmatpush1.msra.mxu0 0.0
  %1743 = vmatprep.subr.mxu0 0.0
  %1744 = vmatpush1.msra.mxu0 0.0
  %1745 = vmatprep.subr.mxu0 0.0
  %1746 = vmatpush1.msra.mxu0 0.0
  %1747 = vmatprep.mubr.f32.mxu0 0.0
  %1748 = vmatmul.mubr.f32.gmra.mrb[0].mxu0 %v1681
  %v1749 = vpop.f32.mrb[0].mxu0
  %v1750 = vadd.f32 0.0, %v1749
  %v1751 = vpop.f32.mrb[0].mxu0
  %1752 = vdwg.mxu0
  %v1753 = vadd.f32 %v1675, %v1750
  %v1754 = vxor.u32 %v1753, 2147483648
  %v1755 = vmul.f32 %v1754, 1.442695
  %v1756 = vpow.pop %v1755
  %v1757 = vadd.f32 %v1756, 1.0
  %v1758 = vrcp.pop %v1757
  %v1759 = vmul.f32 1.0, %v1758
  %v1760 = vtanh.pop %v1753
  %v1761 = vmul.f32 %v1759, %v1500
  %1763 = vrot.lane.b32.xlu0 %v1760, 64
  %v1764 = vpop.permute.xlu0 %1763
  %v1766 = vmul.f32 %v1759, %v1764
  %1768 = vrot.lane.b32.xlu0 %v1766, 32
  %v1769 = vpop.permute.xlu0 %1768
  %v1771 = vadd.f32 %v1761, %v1769
  %v1772 = vtanh.pop %v1771
  %1774 = vrot.lane.b32.xlu0 %v1772, 64
  %v1775 = vpop.permute.xlu0 %1774
  %v1777 = vmul.f32 %v1759, %v1775
  %v1778 = vld [vmem:[#allocation2 + $0x38] sm:$0xff]
  %1780 = vrot.lane.b32.xlu0 %v1607, 32
  %v1781 = vpop.permute.xlu0 %1780
  %v1782 = vsel %vm223, %v1781, 0
  %1784 = vmatprep.subr.mxu0 0.0
  %1785 = vmatpush1.msra.mxu0 %v187
  %1786 = vmatprep.subr.mxu0 0.0
  %1787 = vmatpush1.msra.mxu0 %v188
  %1788 = vmatprep.subr.mxu0 0.0
  %1789 = vmatpush1.msra.mxu0 %v189
  %1790 = vmatprep.subr.mxu0 0.0
  %1791 = vmatpush1.msra.mxu0 %v190
  %1792 = vmatprep.subr.mxu0 0.0
  %1793 = vmatpush1.msra.mxu0 0.0
  %1794 = vmatprep.subr.mxu0 0.0
  %1795 = vmatpush1.msra.mxu0 0.0
  %1796 = vmatprep.subr.mxu0 0.0
  %1797 = vmatpush1.msra.mxu0 0.0
  %1798 = vmatprep.subr.mxu0 0.0
  %1799 = vmatpush1.msra.mxu0 0.0
  %1800 = vmatprep.subr.mxu0 0.0
  %1801 = vmatpush1.msra.mxu0 0.0
  %1802 = vmatprep.subr.mxu0 0.0
  %1803 = vmatpush1.msra.mxu0 0.0
  %1804 = vmatprep.subr.mxu0 0.0
  %1805 = vmatpush1.msra.mxu0 0.0
  %1806 = vmatprep.subr.mxu0 0.0
  %1807 = vmatpush1.msra.mxu0 0.0
  %1808 = vmatprep.subr.mxu0 0.0
  %1809 = vmatpush1.msra.mxu0 0.0
  %1810 = vmatprep.subr.mxu0 0.0
  %1811 = vmatpush1.msra.mxu0 0.0
  %1812 = vmatprep.subr.mxu0 0.0
  %1813 = vmatpush1.msra.mxu0 0.0
  %1814 = vmatprep.subr.mxu0 0.0
  %1815 = vmatpush1.msra.mxu0 0.0
  %1816 = vmatprep.subr.mxu0 0.0
  %1817 = vmatpush1.msra.mxu0 0.0
  %1818 = vmatprep.subr.mxu0 0.0
  %1819 = vmatpush1.msra.mxu0 0.0
  %1820 = vmatprep.subr.mxu0 0.0
  %1821 = vmatpush1.msra.mxu0 0.0
  %1822 = vmatprep.subr.mxu0 0.0
  %1823 = vmatpush1.msra.mxu0 0.0
  %1824 = vmatprep.subr.mxu0 0.0
  %1825 = vmatpush1.msra.mxu0 0.0
  %1826 = vmatprep.subr.mxu0 0.0
  %1827 = vmatpush1.msra.mxu0 0.0
  %1828 = vmatprep.subr.mxu0 0.0
  %1829 = vmatpush1.msra.mxu0 0.0
  %1830 = vmatprep.subr.mxu0 0.0
  %1831 = vmatpush1.msra.mxu0 0.0
  %1832 = vmatprep.subr.mxu0 0.0
  %1833 = vmatpush1.msra.mxu0 0.0
  %1834 = vmatprep.subr.mxu0 0.0
  %1835 = vmatpush1.msra.mxu0 0.0
  %1836 = vmatprep.subr.mxu0 0.0
  %1837 = vmatpush1.msra.mxu0 0.0
  %1838 = vmatprep.subr.mxu0 0.0
  %1839 = vmatpush1.msra.mxu0 0.0
  %1840 = vmatprep.subr.mxu0 0.0
  %1841 = vmatpush1.msra.mxu0 0.0
  %1842 = vmatprep.subr.mxu0 0.0
  %1843 = vmatpush1.msra.mxu0 0.0
  %1844 = vmatprep.subr.mxu0 0.0
  %1845 = vmatpush1.msra.mxu0 0.0
  %1846 = vmatprep.subr.mxu0 0.0
  %1847 = vmatpush1.msra.mxu0 0.0
  %1848 = vmatprep.mubr.f32.mxu0 0.0
  %1849 = vmatmul.mubr.f32.gmra.mrb[0].mxu0 %v1782
  %v1850 = vpop.f32.mrb[0].mxu0
  %v1851 = vadd.f32 0.0, %v1850
  %v1852 = vpop.f32.mrb[0].mxu0
  %1853 = vdwg.mxu0
  %v1854 = vadd.f32 %v1778, %v1851
  %v1855 = vxor.u32 %v1854, 2147483648
  %v1856 = vmul.f32 %v1855, 1.442695
  %v1857 = vpow.pop %v1856
  %v1858 = vadd.f32 %v1857, 1.0
  %v1859 = vrcp.pop %v1858
  %v1860 = vmul.f32 1.0, %v1859
  %v1861 = vtanh.pop %v1854
  %v1862 = vmul.f32 %v1860, %v1601
  %1864 = vrot.lane.b32.xlu0 %v1861, 64
  %v1865 = vpop.permute.xlu0 %1864
  %v1867 = vmul.f32 %v1860, %v1865
  %1869 = vrot.lane.b32.xlu0 %v1867, 32
  %v1870 = vpop.permute.xlu0 %1869
  %v1872 = vadd.f32 %v1862, %v1870
  %v1873 = vtanh.pop %v1872
  %1875 = vrot.lane.b32.xlu0 %v1873, 64
  %v1876 = vpop.permute.xlu0 %1875
  %v1878 = vmul.f32 %v1860, %v1876
  %1879 = vmatprep.subr.mxu0 0.0
  %1880 = vmatpush1.msra.mxu0 %v195
  %1881 = vmatprep.subr.mxu0 0.0
  %1882 = vmatpush1.msra.mxu0 %v196
  %1883 = vmatprep.subr.mxu0 0.0
  %1884 = vmatpush1.msra.mxu0 %v197
  %1885 = vmatprep.subr.mxu0 0.0
  %1886 = vmatpush1.msra.mxu0 %v198
  %1887 = vmatprep.subr.mxu0 0.0
  %1888 = vmatpush1.msra.mxu0 0.0
  %1889 = vmatprep.subr.mxu0 0.0
  %1890 = vmatpush1.msra.mxu0 0.0
  %1891 = vmatprep.subr.mxu0 0.0
  %1892 = vmatpush1.msra.mxu0 0.0
  %1893 = vmatprep.subr.mxu0 0.0
  %1894 = vmatpush1.msra.mxu0 0.0
  %1895 = vmatprep.subr.mxu0 0.0
  %1896 = vmatpush1.msra.mxu0 0.0
  %1897 = vmatprep.subr.mxu0 0.0
  %1898 = vmatpush1.msra.mxu0 0.0
  %1899 = vmatprep.subr.mxu0 0.0
  %1900 = vmatpush1.msra.mxu0 0.0
  %1901 = vmatprep.subr.mxu0 0.0
  %1902 = vmatpush1.msra.mxu0 0.0
  %1903 = vmatprep.subr.mxu0 0.0
  %1904 = vmatpush1.msra.mxu0 0.0
  %1905 = vmatprep.subr.mxu0 0.0
  %1906 = vmatpush1.msra.mxu0 0.0
  %1907 = vmatprep.subr.mxu0 0.0
  %1908 = vmatpush1.msra.mxu0 0.0
  %1909 = vmatprep.subr.mxu0 0.0
  %1910 = vmatpush1.msra.mxu0 0.0
  %1911 = vmatprep.subr.mxu0 0.0
  %1912 = vmatpush1.msra.mxu0 0.0
  %1913 = vmatprep.subr.mxu0 0.0
  %1914 = vmatpush1.msra.mxu0 0.0
  %1915 = vmatprep.subr.mxu0 0.0
  %1916 = vmatpush1.msra.mxu0 0.0
  %1917 = vmatprep.subr.mxu0 0.0
  %1918 = vmatpush1.msra.mxu0 0.0
  %1919 = vmatprep.subr.mxu0 0.0
  %1920 = vmatpush1.msra.mxu0 0.0
  %1921 = vmatprep.subr.mxu0 0.0
  %1922 = vmatpush1.msra.mxu0 0.0
  %1923 = vmatprep.subr.mxu0 0.0
  %1924 = vmatpush1.msra.mxu0 0.0
  %1925 = vmatprep.subr.mxu0 0.0
  %1926 = vmatpush1.msra.mxu0 0.0
  %1927 = vmatprep.subr.mxu0 0.0
  %1928 = vmatpush1.msra.mxu0 0.0
  %1929 = vmatprep.subr.mxu0 0.0
  %1930 = vmatpush1.msra.mxu0 0.0
  %1931 = vmatprep.subr.mxu0 0.0
  %1932 = vmatpush1.msra.mxu0 0.0
  %1933 = vmatprep.subr.mxu0 0.0
  %1934 = vmatpush1.msra.mxu0 0.0
  %1935 = vmatprep.subr.mxu0 0.0
  %1936 = vmatpush1.msra.mxu0 0.0
  %1937 = vmatprep.subr.mxu0 0.0
  %1938 = vmatpush1.msra.mxu0 0.0
  %1939 = vmatprep.subr.mxu0 0.0
  %1940 = vmatpush1.msra.mxu0 0.0
  %1941 = vmatprep.subr.mxu0 0.0
  %1942 = vmatpush1.msra.mxu0 0.0
  %1943 = vmatprep.mubr.f32.mxu0 0.0
  %1944 = vmatmul.mubr.f32.gmra.mrb[0].mxu0 %v1782
  %v1945 = vpop.f32.mrb[0].mxu0
  %v1946 = vadd.f32 %v329, %v1945
  %v1947 = vpop.f32.mrb[0].mxu0
  %1948 = vdwg.mxu0
  %1950 = vrot.lane.b32.xlu0 %v1777, 32
  %v1951 = vpop.permute.xlu0 %1950
  %v1952 = vsel %vm223, %v1951, 0
  %1954 = vmatprep.subr.mxu0 0.0
  %1955 = vmatpush1.msra.mxu0 %v191
  %1956 = vmatprep.subr.mxu0 0.0
  %1957 = vmatpush1.msra.mxu0 %v192
  %1958 = vmatprep.subr.mxu0 0.0
  %1959 = vmatpush1.msra.mxu0 %v193
  %1960 = vmatprep.subr.mxu0 0.0
  %1961 = vmatpush1.msra.mxu0 %v194
  %1962 = vmatprep.subr.mxu0 0.0
  %1963 = vmatpush1.msra.mxu0 0.0
  %1964 = vmatprep.subr.mxu0 0.0
  %1965 = vmatpush1.msra.mxu0 0.0
  %1966 = vmatprep.subr.mxu0 0.0
  %1967 = vmatpush1.msra.mxu0 0.0
  %1968 = vmatprep.subr.mxu0 0.0
  %1969 = vmatpush1.msra.mxu0 0.0
  %1970 = vmatprep.subr.mxu0 0.0
  %1971 = vmatpush1.msra.mxu0 0.0
  %1972 = vmatprep.subr.mxu0 0.0
  %1973 = vmatpush1.msra.mxu0 0.0
  %1974 = vmatprep.subr.mxu0 0.0
  %1975 = vmatpush1.msra.mxu0 0.0
  %1976 = vmatprep.subr.mxu0 0.0
  %1977 = vmatpush1.msra.mxu0 0.0
  %1978 = vmatprep.subr.mxu0 0.0
  %1979 = vmatpush1.msra.mxu0 0.0
  %1980 = vmatprep.subr.mxu0 0.0
  %1981 = vmatpush1.msra.mxu0 0.0
  %1982 = vmatprep.subr.mxu0 0.0
  %1983 = vmatpush1.msra.mxu0 0.0
  %1984 = vmatprep.subr.mxu0 0.0
  %1985 = vmatpush1.msra.mxu0 0.0
  %1986 = vmatprep.subr.mxu0 0.0
  %1987 = vmatpush1.msra.mxu0 0.0
  %1988 = vmatprep.subr.mxu0 0.0
  %1989 = vmatpush1.msra.mxu0 0.0
  %1990 = vmatprep.subr.mxu0 0.0
  %1991 = vmatpush1.msra.mxu0 0.0
  %1992 = vmatprep.subr.mxu0 0.0
  %1993 = vmatpush1.msra.mxu0 0.0
  %1994 = vmatprep.subr.mxu0 0.0
  %1995 = vmatpush1.msra.mxu0 0.0
  %1996 = vmatprep.subr.mxu0 0.0
  %1997 = vmatpush1.msra.mxu0 0.0
  %1998 = vmatprep.subr.mxu0 0.0
  %1999 = vmatpush1.msra.mxu0 0.0
  %2000 = vmatprep.subr.mxu0 0.0
  %2001 = vmatpush1.msra.mxu0 0.0
  %2002 = vmatprep.subr.mxu0 0.0
  %2003 = vmatpush1.msra.mxu0 0.0
  %2004 = vmatprep.subr.mxu0 0.0
  %2005 = vmatpush1.msra.mxu0 0.0
  %2006 = vmatprep.subr.mxu0 0.0
  %2007 = vmatpush1.msra.mxu0 0.0
  %2008 = vmatprep.subr.mxu0 0.0
  %2009 = vmatpush1.msra.mxu0 0.0
  %2010 = vmatprep.subr.mxu0 0.0
  %2011 = vmatpush1.msra.mxu0 0.0
  %2012 = vmatprep.subr.mxu0 0.0
  %2013 = vmatpush1.msra.mxu0 0.0
  %2014 = vmatprep.subr.mxu0 0.0
  %2015 = vmatpush1.msra.mxu0 0.0
  %2016 = vmatprep.subr.mxu0 0.0
  %2017 = vmatpush1.msra.mxu0 0.0
  %2018 = vmatprep.mubr.f32.mxu0 0.0
  %2019 = vmatmul.mubr.f32.gmra.mrb[0].mxu0 %v1952
  %v2020 = vpop.f32.mrb[0].mxu0
  %v2021 = vadd.f32 0.0, %v2020
  %v2022 = vpop.f32.mrb[0].mxu0
  %2023 = vdwg.mxu0
  %v2024 = vadd.f32 %v1946, %v2021
  %v2025 = vxor.u32 %v2024, 2147483648
  %v2026 = vmul.f32 %v2025, 1.442695
  %v2027 = vpow.pop %v2026
  %v2028 = vadd.f32 %v2027, 1.0
  %v2029 = vrcp.pop %v2028
  %v2030 = vmul.f32 1.0, %v2029
  %v2031 = vtanh.pop %v2024
  %v2032 = vmul.f32 %v2030, %v1771
  %2034 = vrot.lane.b32.xlu0 %v2031, 64
  %v2035 = vpop.permute.xlu0 %2034
  %v2037 = vmul.f32 %v2030, %v2035
  %2039 = vrot.lane.b32.xlu0 %v2037, 32
  %v2040 = vpop.permute.xlu0 %2039
  %v2042 = vadd.f32 %v2032, %v2040
  %v2043 = vtanh.pop %v2042
  %2045 = vrot.lane.b32.xlu0 %v2043, 64
  %v2046 = vpop.permute.xlu0 %2045
  %v2048 = vmul.f32 %v2030, %v2046
  %2050 = vrot.lane.b32.xlu0 %v1878, 32
  %v2051 = vpop.permute.xlu0 %2050
  %v2052 = vsel %vm223, %v2051, 0
  %2054 = vmatprep.subr.mxu0 0.0
  %2055 = vmatpush1.msra.mxu0 %v195
  %2056 = vmatprep.subr.mxu0 0.0
  %2057 = vmatpush1.msra.mxu0 %v196
  %2058 = vmatprep.subr.mxu0 0.0
  %2059 = vmatpush1.msra.mxu0 %v197
  %2060 = vmatprep.subr.mxu0 0.0
  %2061 = vmatpush1.msra.mxu0 %v198
  %2062 = vmatprep.subr.mxu0 0.0
  %2063 = vmatpush1.msra.mxu0 0.0
  %2064 = vmatprep.subr.mxu0 0.0
  %2065 = vmatpush1.msra.mxu0 0.0
  %2066 = vmatprep.subr.mxu0 0.0
  %2067 = vmatpush1.msra.mxu0 0.0
  %2068 = vmatprep.subr.mxu0 0.0
  %2069 = vmatpush1.msra.mxu0 0.0
  %2070 = vmatprep.subr.mxu0 0.0
  %2071 = vmatpush1.msra.mxu0 0.0
  %2072 = vmatprep.subr.mxu0 0.0
  %2073 = vmatpush1.msra.mxu0 0.0
  %2074 = vmatprep.subr.mxu0 0.0
  %2075 = vmatpush1.msra.mxu0 0.0
  %2076 = vmatprep.subr.mxu0 0.0
  %2077 = vmatpush1.msra.mxu0 0.0
  %2078 = vmatprep.subr.mxu0 0.0
  %2079 = vmatpush1.msra.mxu0 0.0
  %2080 = vmatprep.subr.mxu0 0.0
  %2081 = vmatpush1.msra.mxu0 0.0
  %2082 = vmatprep.subr.mxu0 0.0
  %2083 = vmatpush1.msra.mxu0 0.0
  %2084 = vmatprep.subr.mxu0 0.0
  %2085 = vmatpush1.msra.mxu0 0.0
  %2086 = vmatprep.subr.mxu0 0.0
  %2087 = vmatpush1.msra.mxu0 0.0
  %2088 = vmatprep.subr.mxu0 0.0
  %2089 = vmatpush1.msra.mxu0 0.0
  %2090 = vmatprep.subr.mxu0 0.0
  %2091 = vmatpush1.msra.mxu0 0.0
  %2092 = vmatprep.subr.mxu0 0.0
  %2093 = vmatpush1.msra.mxu0 0.0
  %2094 = vmatprep.subr.mxu0 0.0
  %2095 = vmatpush1.msra.mxu0 0.0
  %2096 = vmatprep.subr.mxu0 0.0
  %2097 = vmatpush1.msra.mxu0 0.0
  %2098 = vmatprep.subr.mxu0 0.0
  %2099 = vmatpush1.msra.mxu0 0.0
  %2100 = vmatprep.subr.mxu0 0.0
  %2101 = vmatpush1.msra.mxu0 0.0
  %2102 = vmatprep.subr.mxu0 0.0
  %2103 = vmatpush1.msra.mxu0 0.0
  %2104 = vmatprep.subr.mxu0 0.0
  %2105 = vmatpush1.msra.mxu0 0.0
  %2106 = vmatprep.subr.mxu0 0.0
  %2107 = vmatpush1.msra.mxu0 0.0
  %2108 = vmatprep.subr.mxu0 0.0
  %2109 = vmatpush1.msra.mxu0 0.0
  %2110 = vmatprep.subr.mxu0 0.0
  %2111 = vmatpush1.msra.mxu0 0.0
  %2112 = vmatprep.subr.mxu0 0.0
  %2113 = vmatpush1.msra.mxu0 0.0
  %2114 = vmatprep.subr.mxu0 0.0
  %2115 = vmatpush1.msra.mxu0 0.0
  %2116 = vmatprep.subr.mxu0 0.0
  %2117 = vmatpush1.msra.mxu0 0.0
  %2118 = vmatprep.mubr.f32.mxu0 0.0
  %2119 = vmatmul.mubr.f32.gmra.mrb[0].mxu0 %v2052
  %v2120 = vpop.f32.mrb[0].mxu0
  %v2121 = vadd.f32 %v329, %v2120
  %v2122 = vpop.f32.mrb[0].mxu0
  %2123 = vdwg.mxu0
  %2125 = vrot.lane.b32.xlu0 %v2048, 32
  %v2126 = vpop.permute.xlu0 %2125
  %v2127 = vsel %vm223, %v2126, 0
  %2129 = vmatprep.subr.mxu0 0.0
  %2130 = vmatpush1.msra.mxu0 %v191
  %2131 = vmatprep.subr.mxu0 0.0
  %2132 = vmatpush1.msra.mxu0 %v192
  %2133 = vmatprep.subr.mxu0 0.0
  %2134 = vmatpush1.msra.mxu0 %v193
  %2135 = vmatprep.subr.mxu0 0.0
  %2136 = vmatpush1.msra.mxu0 %v194
  %2137 = vmatprep.subr.mxu0 0.0
  %2138 = vmatpush1.msra.mxu0 0.0
  %2139 = vmatprep.subr.mxu0 0.0
  %2140 = vmatpush1.msra.mxu0 0.0
  %2141 = vmatprep.subr.mxu0 0.0
  %2142 = vmatpush1.msra.mxu0 0.0
  %2143 = vmatprep.subr.mxu0 0.0
  %2144 = vmatpush1.msra.mxu0 0.0
  %2145 = vmatprep.subr.mxu0 0.0
  %2146 = vmatpush1.msra.mxu0 0.0
  %2147 = vmatprep.subr.mxu0 0.0
  %2148 = vmatpush1.msra.mxu0 0.0
  %2149 = vmatprep.subr.mxu0 0.0
  %2150 = vmatpush1.msra.mxu0 0.0
  %2151 = vmatprep.subr.mxu0 0.0
  %2152 = vmatpush1.msra.mxu0 0.0
  %2153 = vmatprep.subr.mxu0 0.0
  %2154 = vmatpush1.msra.mxu0 0.0
  %2155 = vmatprep.subr.mxu0 0.0
  %2156 = vmatpush1.msra.mxu0 0.0
  %2157 = vmatprep.subr.mxu0 0.0
  %2158 = vmatpush1.msra.mxu0 0.0
  %2159 = vmatprep.subr.mxu0 0.0
  %2160 = vmatpush1.msra.mxu0 0.0
  %2161 = vmatprep.subr.mxu0 0.0
  %2162 = vmatpush1.msra.mxu0 0.0
  %2163 = vmatprep.subr.mxu0 0.0
  %2164 = vmatpush1.msra.mxu0 0.0
  %2165 = vmatprep.subr.mxu0 0.0
  %2166 = vmatpush1.msra.mxu0 0.0
  %2167 = vmatprep.subr.mxu0 0.0
  %2168 = vmatpush1.msra.mxu0 0.0
  %2169 = vmatprep.subr.mxu0 0.0
  %2170 = vmatpush1.msra.mxu0 0.0
  %2171 = vmatprep.subr.mxu0 0.0
  %2172 = vmatpush1.msra.mxu0 0.0
  %2173 = vmatprep.subr.mxu0 0.0
  %2174 = vmatpush1.msra.mxu0 0.0
  %2175 = vmatprep.subr.mxu0 0.0
  %2176 = vmatpush1.msra.mxu0 0.0
  %2177 = vmatprep.subr.mxu0 0.0
  %2178 = vmatpush1.msra.mxu0 0.0
  %2179 = vmatprep.subr.mxu0 0.0
  %2180 = vmatpush1.msra.mxu0 0.0
  %2181 = vmatprep.subr.mxu0 0.0
  %2182 = vmatpush1.msra.mxu0 0.0
  %2183 = vmatprep.subr.mxu0 0.0
  %2184 = vmatpush1.msra.mxu0 0.0
  %2185 = vmatprep.subr.mxu0 0.0
  %2186 = vmatpush1.msra.mxu0 0.0
  %2187 = vmatprep.subr.mxu0 0.0
  %2188 = vmatpush1.msra.mxu0 0.0
  %2189 = vmatprep.subr.mxu0 0.0
  %2190 = vmatpush1.msra.mxu0 0.0
  %2191 = vmatprep.subr.mxu0 0.0
  %2192 = vmatpush1.msra.mxu0 0.0
  %2193 = vmatprep.mubr.f32.mxu0 0.0
  %2194 = vmatmul.mubr.f32.gmra.mrb[0].mxu0 %v2127
  %v2195 = vpop.f32.mrb[0].mxu0
  %v2196 = vadd.f32 0.0, %v2195
  %v2197 = vpop.f32.mrb[0].mxu0
  %2198 = vdwg.mxu0
  %v2199 = vadd.f32 %v2121, %v2196
  %v2200 = vxor.u32 %v2199, 2147483648
  %v2201 = vmul.f32 %v2200, 1.442695
  %v2202 = vpow.pop %v2201
  %v2203 = vadd.f32 %v2202, 1.0
  %v2204 = vrcp.pop %v2203
  %v2205 = vmul.f32 1.0, %v2204
  %v2206 = vtanh.pop %v2199
  %v2207 = vmul.f32 %v2205, %v2042
  %2209 = vrot.lane.b32.xlu0 %v2206, 64
  %v2210 = vpop.permute.xlu0 %2209
  %v2212 = vmul.f32 %v2205, %v2210
  %2214 = vrot.lane.b32.xlu0 %v2212, 32
  %v2215 = vpop.permute.xlu0 %2214
  %v2217 = vadd.f32 %v2207, %v2215
  %v2218 = vtanh.pop %v2217
  %2220 = vrot.lane.b32.xlu0 %v2218, 64
  %v2221 = vpop.permute.xlu0 %2220
  %v2223 = vmul.f32 %v2205, %v2221
  %v2224 = vld [vmem:[%s7] sm:$0xff]
  %v2225 = vld [vmem:[%s7 + $0x8] sm:$0xff]
  %v2226 = vld [vmem:[%s7 + $0x10] sm:$0xff]
  %v2227 = vld [vmem:[%s7 + $0x18] sm:$0xff]
  %v2228 = vld [vmem:[%s8] sm:$0x1]
  %v2230 = vlaneseq
  %v2231 = vshrl.u32 %v2230, 7
  %v2232 = vsub.s32 0, %v2231
  %v2233 = vrot.slane %v2228, %v2232
  %2236 = vrot.lane.b32.xlu0 %v2223, 32
  %v2237 = vpop.permute.xlu0 %2236
  %v2238 = vsel %vm223, %v2237, 0
  %2240 = vmatprep.subr.mxu0 0.0
  %2241 = vmatpush1.msra.mxu0 %v2224
  %2242 = vmatprep.subr.mxu0 0.0
  %2243 = vmatpush1.msra.mxu0 %v2225
  %2244 = vmatprep.subr.mxu0 0.0
  %2245 = vmatpush1.msra.mxu0 %v2226
  %2246 = vmatprep.subr.mxu0 0.0
  %2247 = vmatpush1.msra.mxu0 %v2227
  %2248 = vmatprep.subr.mxu0 0.0
  %2249 = vmatpush1.msra.mxu0 0.0
  %2250 = vmatprep.subr.mxu0 0.0
  %2251 = vmatpush1.msra.mxu0 0.0
  %2252 = vmatprep.subr.mxu0 0.0
  %2253 = vmatpush1.msra.mxu0 0.0
  %2254 = vmatprep.subr.mxu0 0.0
  %2255 = vmatpush1.msra.mxu0 0.0
  %2256 = vmatprep.subr.mxu0 0.0
  %2257 = vmatpush1.msra.mxu0 0.0
  %2258 = vmatprep.subr.mxu0 0.0
  %2259 = vmatpush1.msra.mxu0 0.0
  %2260 = vmatprep.subr.mxu0 0.0
  %2261 = vmatpush1.msra.mxu0 0.0
  %2262 = vmatprep.subr.mxu0 0.0
  %2263 = vmatpush1.msra.mxu0 0.0
  %2264 = vmatprep.subr.mxu0 0.0
  %2265 = vmatpush1.msra.mxu0 0.0
  %2266 = vmatprep.subr.mxu0 0.0
  %2267 = vmatpush1.msra.mxu0 0.0
  %2268 = vmatprep.subr.mxu0 0.0
  %2269 = vmatpush1.msra.mxu0 0.0
  %2270 = vmatprep.subr.mxu0 0.0
  %2271 = vmatpush1.msra.mxu0 0.0
  %2272 = vmatprep.subr.mxu0 0.0
  %2273 = vmatpush1.msra.mxu0 0.0
  %2274 = vmatprep.subr.mxu0 0.0
  %2275 = vmatpush1.msra.mxu0 0.0
  %2276 = vmatprep.subr.mxu0 0.0
  %2277 = vmatpush1.msra.mxu0 0.0
  %2278 = vmatprep.subr.mxu0 0.0
  %2279 = vmatpush1.msra.mxu0 0.0
  %2280 = vmatprep.subr.mxu0 0.0
  %2281 = vmatpush1.msra.mxu0 0.0
  %2282 = vmatprep.subr.mxu0 0.0
  %2283 = vmatpush1.msra.mxu0 0.0
  %2284 = vmatprep.subr.mxu0 0.0
  %2285 = vmatpush1.msra.mxu0 0.0
  %2286 = vmatprep.subr.mxu0 0.0
  %2287 = vmatpush1.msra.mxu0 0.0
  %2288 = vmatprep.subr.mxu0 0.0
  %2289 = vmatpush1.msra.mxu0 0.0
  %2290 = vmatprep.subr.mxu0 0.0
  %2291 = vmatpush1.msra.mxu0 0.0
  %2292 = vmatprep.subr.mxu0 0.0
  %2293 = vmatpush1.msra.mxu0 0.0
  %2294 = vmatprep.subr.mxu0 0.0
  %2295 = vmatpush1.msra.mxu0 0.0
  %2296 = vmatprep.subr.mxu0 0.0
  %2297 = vmatpush1.msra.mxu0 0.0
  %2298 = vmatprep.subr.mxu0 0.0
  %2299 = vmatpush1.msra.mxu0 0.0
  %2300 = vmatprep.subr.mxu0 0.0
  %2301 = vmatpush1.msra.mxu0 0.0
  %2302 = vmatprep.subr.mxu0 0.0
  %2303 = vmatpush1.msra.mxu0 0.0
  %2304 = vmatprep.mubr.f32.mxu0 0.0
  %2305 = vmatmul.mubr.f32.gmra.mrb[0].mxu0 %v2238
  %v2306 = vpop.f32.mrb[0].mxu0
  %v2307 = vadd.f32 %v2233, %v2306
  %v2308 = vpop.f32.mrb[0].mxu0
  %2309 = vdwg.mxu0
  %vm2310 = vcmask 64512
  %2311 = vst.msk [vmem:[%s9] sm:$0xff] %vm2310, %v2307
  // Predicated region
  $region38: #{lstm_class_forward.1} parent=0 // pred_check
    _
  $region39: #{lstm_class_forward.1} parent=0 // pred_check_branch
    %2313 = sbr.rel (0) target = $region41
  $region40: #{lstm_class_forward.1} parent=0 // pred_region
    _
  $region41: #{lstm_class_forward.1} parent=0 // pred_fallthru
    _
  // Predicated region
  $region42: #{lstm_class_forward.1} parent=0 // pred_check
    _
  $region43: #{lstm_class_forward.1} parent=0 // pred_check_branch
    %2315 = sbr.rel (0) target = $region45
  $region44: #{lstm_class_forward.1} parent=0 // pred_region
    _
  $region45: #{lstm_class_forward.1} parent=0 // pred_fallthru
    _

</llo_original>
